<compile_context>
chip_gen: v5e
topology: v5e:2x2
jax: 0.10.0
libtpu: 0.0.40
codegen_flags: <defaults>
</compile_context>

<pallas_src>
import jax
import jax.numpy as jnp
from jax import lax
from jax.experimental import pallas as pl
from jax.experimental.pallas import tpu as pltpu

N_EMBED = 384
BLOCK_SIZE = 128          # max context; only T <= BLOCK_SIZE is supported
N_HEADS = 6               # number_heads * head_size must equal n_embed
HEAD_SIZE = 64
DROPOUT_P = 0.2           # nn.Dropout is identity in eval mode (see TODOs)


def mha_kernel(x_ref, wqkv_ref, wproj_ref, bproj_ref, o_ref):
    Bb, T, C = x_ref.shape
    NH, H = N_HEADS, HEAD_SIZE

    # Whole (Bb, T, C) slab; bf16 operands for the MXU, f32 accumulation.
    x2 = x_ref[...].reshape(Bb * T, C)                        # (Bb*T, C) bf16

    # Single fused QKV projection: (Bb*T, 384) @ (384, 1152) -> one MXU
    # weight-push/drain sequence instead of three narrow ones.
    qkv = jnp.dot(x2, wqkv_ref[...], preferred_element_type=jnp.float32)

    scale = C ** (-0.5)   # matches the module: C**-0.5 (n_embed), NOT head_dim
    # bf16 casts taken directly off 128-aligned f32 slices (offsets 0/384/768)
    # so the big f32 intermediate is released immediately.
    k3 = qkv[:, 0 * C:1 * C].astype(jnp.bfloat16).reshape(Bb, T, C)
    q3 = (qkv[:, 1 * C:2 * C] * scale).astype(jnp.bfloat16).reshape(Bb, T, C)
    v3 = qkv[:, 2 * C:3 * C].astype(jnp.bfloat16).reshape(Bb, T, C)

    # Causal mask built once as (T, T); jnp.where broadcasts it over Bb.
    row = lax.broadcasted_iota(jnp.int32, (T, T), 0)
    col = lax.broadcasted_iota(jnp.int32, (T, T), 1)
    causal = col <= row                                       # (T, T) bool

    head_outs = []
    for h in range(NH):                                       # static unroll
        sl = slice(h * H, (h + 1) * H)
        qh, kh, vh = q3[:, :, sl], k3[:, :, sl], v3[:, :, sl]

        # scores: contract the head dim directly (no materialized k.T)
        wei = lax.dot_general(
            qh, kh, (((2,), (2,)), ((0,), (0,))),
            preferred_element_type=jnp.float32)               # (Bb, T, T) f32
        wei = jnp.where(causal, wei, -jnp.inf)

        m = jnp.max(wei, axis=-1, keepdims=True)
        e = jnp.exp(wei - m)
        s = jnp.sum(e, axis=-1, keepdims=True)
        p = e * pl.reciprocal(s, approx=True)                 # softmax, f32
        # TODO(synk): nn.Dropout(0.2) on the attention probabilities is a
        # training-mode op; eval-mode (identity) semantics are reproduced here.

        oh = lax.dot_general(
            p.astype(jnp.bfloat16), vh, (((2,), (1,)), ((0,), (0,))),
            preferred_element_type=jnp.float32)               # (Bb, T, H) f32
        head_outs.append(oh.astype(jnp.bfloat16))             # pack in bf16

    # torch.cat(heads, dim=-1): bf16 packing halves the lane-relayout traffic;
    # keeping a single K=384 projection keeps the MXU fully fed.
    cat = jnp.concatenate(head_outs, axis=-1).reshape(Bb * T, C)

    # Output projection Linear(n_embed, n_embed) with bias (bias add in f32).
    y = jnp.dot(cat, wproj_ref[...], preferred_element_type=jnp.float32)
    y = y + bproj_ref[...]
    # TODO(synk): nn.Dropout(0.2) after the projection is identity in eval mode.

    o_ref[...] = y.reshape(Bb, T, C).astype(o_ref.dtype)


def _pick_batch_block(B, max_bb=4):
    """Largest divisor of B, capped at 4 (v7x: 64 MiB VMEM/TC), that keeps
    >= 4 grid steps (DMA pipelining on single-TC v5e/v6e) with an even step
    count (2-TC balance on v7x); relaxes gracefully for small B."""
    if B <= 2:
        return 1
    for min_steps, need_even in ((4, True), (4, False), (2, True), (2, False)):
        for bb in range(min(max_bb, B), 0, -1):
            if B % bb:
                continue
            steps = B // bb
            if steps >= min_steps and (steps % 2 == 0 or not need_even):
                return bb
    return 1


def multi_head_attention_forward(x, w_key, w_query, w_value, w_proj, b_proj):
    """
    x:        (B, T, C) f32
    w_key/w_query/w_value: (C, NH*H) = (C, C); head h owns columns [h*H,(h+1)*H)
              (i.e. per-head nn.Linear weights, transposed, concatenated).
    w_proj:   (C, C) transposed projection weight; b_proj: (C,) bias.
    Returns (B, T, C) f32 (eval-mode forward of MultiHeadAttention).
    """
    B, T, C = x.shape
    NH, H = N_HEADS, HEAD_SIZE
    assert C == N_EMBED and T <= BLOCK_SIZE and NH * H == C
    assert w_key.shape == (C, C) and w_query.shape == (C, C)
    assert w_value.shape == (C, C) and w_proj.shape == (C, C)

    Bb = _pick_batch_block(B)
    grid = (B // Bb,)

    # bf16 inputs halve HBM traffic; MXU takes bf16 operands with f32 acc.
    x_bf = x.astype(jnp.bfloat16)
    # Fused QKV weight: columns [0:C]=K, [C:2C]=Q, [2C:3C]=V (128-aligned).
    wqkv_bf = jnp.concatenate([w_key, w_query, w_value],
                              axis=1).astype(jnp.bfloat16)        # (C, 3C)
    wproj_bf = w_proj.astype(jnp.bfloat16)
    bproj2 = b_proj.reshape(1, C).astype(jnp.float32)

    flops = int(
        2 * B * T * C * (3 * C)            # fused QKV projection
        + 4 * B * NH * T * T * H           # q@k^T and p@v
        + 2 * B * T * C * C                # output projection
    )
    cost = pl.CostEstimate(
        flops=flops,
        transcendentals=int(B * NH * T * T),
        bytes_accessed=int(B * T * C * 2                      # x (bf16)
                           + (3 * C * C + C * C) * 2 + C * 4  # weights + bias
                           + B * T * C * 4),                  # output (f32)
    )

    return pl.pallas_call(
        mha_kernel,
        out_shape=jax.ShapeDtypeStruct((B, T, C), jnp.float32),
        grid_spec=pltpu.PrefetchScalarGridSpec(
            num_scalar_prefetch=0,
            grid=grid,
            in_specs=[
                pl.BlockSpec((Bb, T, C), lambda i: (i, 0, 0)),    # x block
                pl.BlockSpec((C, 3 * C), lambda i: (0, 0)),       # fused Wqkv
                pl.BlockSpec((C, C), lambda i: (0, 0)),           # Wproj
                pl.BlockSpec((1, C), lambda i: (0, 0)),           # bias
            ],
            out_specs=pl.BlockSpec((Bb, T, C), lambda i: (i, 0, 0)),
        ),
        compiler_params=pltpu.CompilerParams(
            dimension_semantics=("parallel",),
            vmem_limit_bytes=32 * 1024 * 1024,
        ),
        cost_estimate=cost,
    )(x_bf, wqkv_bf, wproj_bf, bproj2)


if __name__ == "__main__":
    B, T, C = 2, 8, N_EMBED
    NH, H = N_HEADS, HEAD_SIZE

    key = jax.random.PRNGKey(0)
    kx, kk, kq, kv, kp, kb = jax.random.split(key, 6)

    x = jax.random.normal(kx, (B, T, C), dtype=jnp.float32)
    # per-head Linear(n_embed, head_size, bias=False) weights, transposed and
    # concatenated over heads along the output axis -> (C, NH*H) == (C, C)
    w_key = jax.random.normal(kk, (C, NH * H), dtype=jnp.float32) * 0.02
    w_query = jax.random.normal(kq, (C, NH * H), dtype=jnp.float32) * 0.02
    w_value = jax.random.normal(kv, (C, NH * H), dtype=jnp.float32) * 0.02
    # output projection Linear(n_embed, n_embed) (with bias), transposed
    w_proj = jax.random.normal(kp, (C, C), dtype=jnp.float32) * 0.02
    b_proj = jax.random.normal(kb, (C,), dtype=jnp.float32) * 0.02

    out = multi_head_attention_forward(x, w_key, w_query, w_value, w_proj, b_proj)
    out = jax.block_until_ready(out)

    # pure-JAX f32 reference reproducing the PyTorch module (eval mode)
    def ref_forward(x):
        mask = jnp.tril(jnp.ones((T, T), dtype=bool))
        outs = []
        for h in range(NH):
            sl = slice(h * H, (h + 1) * H)
            k = x @ w_key[:, sl]
            q = x @ w_query[:, sl]
            v = x @ w_value[:, sl]
            wei = (q @ jnp.swapaxes(k, -2, -1)) * (C ** -0.5)
            wei = jnp.where(mask, wei, -jnp.inf)
            wei = jax.nn.softmax(wei, axis=-1)
            outs.append(wei @ v)
        cat = jnp.concatenate(outs, axis=-1)
        return cat @ w_proj + b_proj

    ref = ref_forward(x)
    assert out.shape == (B, T, C)
    max_err = float(jnp.max(jnp.abs(out - ref)))
    # bf16 MXU operands with f32 accumulation: small absolute deviation expected
    assert jnp.allclose(out, ref, atol=2e-2, rtol=2e-2), f"max abs err {max_err}"
    print("KERNEL_OK")
</pallas_src>

<mosaic_0001>
module attributes {stable_mosaic.version = 11 : i64} {
  func.func @mha_kernel(%arg0: i32, %arg1: memref<1x8x384xbf16, #tpu.memory_space<vmem>>, %arg2: memref<384x1152xbf16, #tpu.memory_space<vmem>>, %arg3: memref<384x384xbf16, #tpu.memory_space<vmem>>, %arg4: memref<1x384xf32, #tpu.memory_space<vmem>>, %arg5: memref<1x8x384xf32, #tpu.memory_space<vmem>>) attributes {dimension_semantics = [#tpu.dimension_semantics<parallel>], iteration_bounds = array<i64: 2>, scalar_prefetch = 0 : i64, scratch_operands = 0 : i64, tpu.core_type = #tpu.core_type<tc>, window_params = [{transform_indices = @transform_0, window_bounds = array<i64: 1, 8, 384>}, {pipeline_mode = #tpu.pipeline_mode<synchronous>, transform_indices = @transform_1, window_bounds = array<i64: 384, 1152>}, {pipeline_mode = #tpu.pipeline_mode<synchronous>, transform_indices = @transform_2, window_bounds = array<i64: 384, 384>}, {pipeline_mode = #tpu.pipeline_mode<synchronous>, transform_indices = @transform_3, window_bounds = array<i64: 1, 384>}, {transform_indices = @transform_4, window_bounds = array<i64: 1, 8, 384>}]} {
    %c0 = arith.constant 0 : index
    %c0_0 = arith.constant 0 : index
    %c0_1 = arith.constant 0 : index
    %0 = vector.load %arg1[%c0, %c0_0, %c0_1] : memref<1x8x384xbf16, #tpu.memory_space<vmem>>, vector<1x8x384xbf16>
    %1 = vector.shape_cast %0 : vector<1x8x384xbf16> to vector<8x384xbf16>
    %c0_2 = arith.constant 0 : index
    %c0_3 = arith.constant 0 : index
    %2 = vector.load %arg2[%c0_2, %c0_3] : memref<384x1152xbf16, #tpu.memory_space<vmem>>, vector<384x1152xbf16>
    %cst = arith.constant dense<0.000000e+00> : vector<8x1152xf32>
    %3 = tpu.matmul %1, %2, %cst {dimension_numbers = #tpu.dot_dimension_numbers<[1], [0], [0], [1], [0, 0, 1, 1], [], []>} : vector<8x384xbf16>, vector<384x1152xbf16>, vector<8x1152xf32> -> vector<8x1152xf32>
    %4 = vector.extract_strided_slice %3 {offsets = [0, 0], sizes = [8, 384], strides = [1, 1]} : vector<8x1152xf32> to vector<8x384xf32>
    %5 = arith.truncf %4 : vector<8x384xf32> to vector<8x384xbf16>
    %6 = vector.shape_cast %5 : vector<8x384xbf16> to vector<1x8x384xbf16>
    %7 = vector.extract_strided_slice %3 {offsets = [0, 384], sizes = [8, 384], strides = [1, 1]} : vector<8x1152xf32> to vector<8x384xf32>
    %cst_4 = arith.constant 0.0510310382 : f32
    %8 = vector.broadcast %cst_4 : f32 to vector<8x384xf32>
    %9 = arith.mulf %7, %8 : vector<8x384xf32>
    %10 = arith.truncf %9 : vector<8x384xf32> to vector<8x384xbf16>
    %11 = vector.shape_cast %10 : vector<8x384xbf16> to vector<1x8x384xbf16>
    %12 = vector.extract_strided_slice %3 {offsets = [0, 768], sizes = [8, 384], strides = [1, 1]} : vector<8x1152xf32> to vector<8x384xf32>
    %13 = arith.truncf %12 : vector<8x384xf32> to vector<8x384xbf16>
    %14 = vector.shape_cast %13 : vector<8x384xbf16> to vector<1x8x384xbf16>
    %15 = tpu.iota {dimensions = array<i32: 0>} : vector<8x8xi32>
    %16 = tpu.iota {dimensions = array<i32: 1>} : vector<8x8xi32>
    %17 = arith.cmpi sle, %16, %15 : vector<8x8xi32>
    %18 = vector.extract_strided_slice %11 {offsets = [0, 0, 0], sizes = [1, 8, 64], strides = [1, 1, 1]} : vector<1x8x384xbf16> to vector<1x8x64xbf16>
    %19 = vector.extract_strided_slice %6 {offsets = [0, 0, 0], sizes = [1, 8, 64], strides = [1, 1, 1]} : vector<1x8x384xbf16> to vector<1x8x64xbf16>
    %20 = vector.extract_strided_slice %14 {offsets = [0, 0, 0], sizes = [1, 8, 64], strides = [1, 1, 1]} : vector<1x8x384xbf16> to vector<1x8x64xbf16>
    %cst_5 = arith.constant dense<0.000000e+00> : vector<1x8x8xf32>
    %21 = tpu.matmul %18, %19, %cst_5 {dimension_numbers = #tpu.dot_dimension_numbers<[2], [2], [1], [1], [0, 0, 0, 1, 1, 1], [0], [0]>} : vector<1x8x64xbf16>, vector<1x8x64xbf16>, vector<1x8x8xf32> -> vector<1x8x8xf32>
    %cst_6 = arith.constant 0xFF800000 : f32
    %22 = vector.shape_cast %17 : vector<8x8xi1> to vector<1x8x8xi1>
    %23 = vector.broadcast %cst_6 : f32 to vector<1x8x8xf32>
    %24 = arith.select %22, %21, %23 : vector<1x8x8xi1>, vector<1x8x8xf32>
    %cst_7 = arith.constant dense<0xFF800000> : vector<1x8xf32>
    %25 = vector.multi_reduction <maximumf>, %24, %cst_7 [2] : vector<1x8x8xf32> to vector<1x8xf32>
    %26 = vector.shape_cast %25 : vector<1x8xf32> to vector<1x8x1xf32>
    %27 = vector.broadcast %26 : vector<1x8x1xf32> to vector<1x8x8xf32>
    %28 = arith.subf %24, %27 : vector<1x8x8xf32>
    %29 = math.exp %28 : vector<1x8x8xf32>
    %cst_8 = arith.constant dense<0.000000e+00> : vector<1x8xf32>
    %30 = vector.multi_reduction <add>, %29, %cst_8 [2] : vector<1x8x8xf32> to vector<1x8xf32>
    %31 = vector.shape_cast %30 : vector<1x8xf32> to vector<1x8x1xf32>
    %32 = tpu.reciprocal %31 {approx = true} : vector<1x8x1xf32> -> vector<1x8x1xf32>
    %33 = vector.broadcast %32 : vector<1x8x1xf32> to vector<1x8x8xf32>
    %34 = arith.mulf %29, %33 : vector<1x8x8xf32>
    %35 = arith.truncf %34 : vector<1x8x8xf32> to vector<1x8x8xbf16>
    %cst_9 = arith.constant dense<0.000000e+00> : vector<1x8x64xf32>
    %36 = tpu.matmul %35, %20, %cst_9 {dimension_numbers = #tpu.dot_dimension_numbers<[2], [1], [1], [2], [0, 0, 0, 1, 1, 2], [0], [0]>} : vector<1x8x8xbf16>, vector<1x8x64xbf16>, vector<1x8x64xf32> -> vector<1x8x64xf32>
    %37 = arith.truncf %36 : vector<1x8x64xf32> to vector<1x8x64xbf16>
    %38 = vector.extract_strided_slice %11 {offsets = [0, 0, 64], sizes = [1, 8, 64], strides = [1, 1, 1]} : vector<1x8x384xbf16> to vector<1x8x64xbf16>
    %39 = vector.extract_strided_slice %6 {offsets = [0, 0, 64], sizes = [1, 8, 64], strides = [1, 1, 1]} : vector<1x8x384xbf16> to vector<1x8x64xbf16>
    %40 = vector.extract_strided_slice %14 {offsets = [0, 0, 64], sizes = [1, 8, 64], strides = [1, 1, 1]} : vector<1x8x384xbf16> to vector<1x8x64xbf16>
    %cst_10 = arith.constant dense<0.000000e+00> : vector<1x8x8xf32>
    %41 = tpu.matmul %38, %39, %cst_10 {dimension_numbers = #tpu.dot_dimension_numbers<[2], [2], [1], [1], [0, 0, 0, 1, 1, 1], [0], [0]>} : vector<1x8x64xbf16>, vector<1x8x64xbf16>, vector<1x8x8xf32> -> vector<1x8x8xf32>
    %cst_11 = arith.constant 0xFF800000 : f32
    %42 = vector.shape_cast %17 : vector<8x8xi1> to vector<1x8x8xi1>
    %43 = vector.broadcast %cst_11 : f32 to vector<1x8x8xf32>
    %44 = arith.select %42, %41, %43 : vector<1x8x8xi1>, vector<1x8x8xf32>
    %cst_12 = arith.constant dense<0xFF800000> : vector<1x8xf32>
    %45 = vector.multi_reduction <maximumf>, %44, %cst_12 [2] : vector<1x8x8xf32> to vector<1x8xf32>
    %46 = vector.shape_cast %45 : vector<1x8xf32> to vector<1x8x1xf32>
    %47 = vector.broadcast %46 : vector<1x8x1xf32> to vector<1x8x8xf32>
    %48 = arith.subf %44, %47 : vector<1x8x8xf32>
    %49 = math.exp %48 : vector<1x8x8xf32>
    %cst_13 = arith.constant dense<0.000000e+00> : vector<1x8xf32>
    %50 = vector.multi_reduction <add>, %49, %cst_13 [2] : vector<1x8x8xf32> to vector<1x8xf32>
    %51 = vector.shape_cast %50 : vector<1x8xf32> to vector<1x8x1xf32>
    %52 = tpu.reciprocal %51 {approx = true} : vector<1x8x1xf32> -> vector<1x8x1xf32>
    %53 = vector.broadcast %52 : vector<1x8x1xf32> to vector<1x8x8xf32>
    %54 = arith.mulf %49, %53 : vector<1x8x8xf32>
    %55 = arith.truncf %54 : vector<1x8x8xf32> to vector<1x8x8xbf16>
    %cst_14 = arith.constant dense<0.000000e+00> : vector<1x8x64xf32>
    %56 = tpu.matmul %55, %40, %cst_14 {dimension_numbers = #tpu.dot_dimension_numbers<[2], [1], [1], [2], [0, 0, 0, 1, 1, 2], [0], [0]>} : vector<1x8x8xbf16>, vector<1x8x64xbf16>, vector<1x8x64xf32> -> vector<1x8x64xf32>
    %57 = arith.truncf %56 : vector<1x8x64xf32> to vector<1x8x64xbf16>
    %58 = vector.extract_strided_slice %11 {offsets = [0, 0, 128], sizes = [1, 8, 64], strides = [1, 1, 1]} : vector<1x8x384xbf16> to vector<1x8x64xbf16>
    %59 = vector.extract_strided_slice %6 {offsets = [0, 0, 128], sizes = [1, 8, 64], strides = [1, 1, 1]} : vector<1x8x384xbf16> to vector<1x8x64xbf16>
    %60 = vector.extract_strided_slice %14 {offsets = [0, 0, 128], sizes = [1, 8, 64], strides = [1, 1, 1]} : vector<1x8x384xbf16> to vector<1x8x64xbf16>
    %cst_15 = arith.constant dense<0.000000e+00> : vector<1x8x8xf32>
    %61 = tpu.matmul %58, %59, %cst_15 {dimension_numbers = #tpu.dot_dimension_numbers<[2], [2], [1], [1], [0, 0, 0, 1, 1, 1], [0], [0]>} : vector<1x8x64xbf16>, vector<1x8x64xbf16>, vector<1x8x8xf32> -> vector<1x8x8xf32>
    %cst_16 = arith.constant 0xFF800000 : f32
    %62 = vector.shape_cast %17 : vector<8x8xi1> to vector<1x8x8xi1>
    %63 = vector.broadcast %cst_16 : f32 to vector<1x8x8xf32>
    %64 = arith.select %62, %61, %63 : vector<1x8x8xi1>, vector<1x8x8xf32>
    %cst_17 = arith.constant dense<0xFF800000> : vector<1x8xf32>
    %65 = vector.multi_reduction <maximumf>, %64, %cst_17 [2] : vector<1x8x8xf32> to vector<1x8xf32>
    %66 = vector.shape_cast %65 : vector<1x8xf32> to vector<1x8x1xf32>
    %67 = vector.broadcast %66 : vector<1x8x1xf32> to vector<1x8x8xf32>
    %68 = arith.subf %64, %67 : vector<1x8x8xf32>
    %69 = math.exp %68 : vector<1x8x8xf32>
    %cst_18 = arith.constant dense<0.000000e+00> : vector<1x8xf32>
    %70 = vector.multi_reduction <add>, %69, %cst_18 [2] : vector<1x8x8xf32> to vector<1x8xf32>
    %71 = vector.shape_cast %70 : vector<1x8xf32> to vector<1x8x1xf32>
    %72 = tpu.reciprocal %71 {approx = true} : vector<1x8x1xf32> -> vector<1x8x1xf32>
    %73 = vector.broadcast %72 : vector<1x8x1xf32> to vector<1x8x8xf32>
    %74 = arith.mulf %69, %73 : vector<1x8x8xf32>
    %75 = arith.truncf %74 : vector<1x8x8xf32> to vector<1x8x8xbf16>
    %cst_19 = arith.constant dense<0.000000e+00> : vector<1x8x64xf32>
    %76 = tpu.matmul %75, %60, %cst_19 {dimension_numbers = #tpu.dot_dimension_numbers<[2], [1], [1], [2], [0, 0, 0, 1, 1, 2], [0], [0]>} : vector<1x8x8xbf16>, vector<1x8x64xbf16>, vector<1x8x64xf32> -> vector<1x8x64xf32>
    %77 = arith.truncf %76 : vector<1x8x64xf32> to vector<1x8x64xbf16>
    %78 = vector.extract_strided_slice %11 {offsets = [0, 0, 192], sizes = [1, 8, 64], strides = [1, 1, 1]} : vector<1x8x384xbf16> to vector<1x8x64xbf16>
    %79 = vector.extract_strided_slice %6 {offsets = [0, 0, 192], sizes = [1, 8, 64], strides = [1, 1, 1]} : vector<1x8x384xbf16> to vector<1x8x64xbf16>
    %80 = vector.extract_strided_slice %14 {offsets = [0, 0, 192], sizes = [1, 8, 64], strides = [1, 1, 1]} : vector<1x8x384xbf16> to vector<1x8x64xbf16>
    %cst_20 = arith.constant dense<0.000000e+00> : vector<1x8x8xf32>
    %81 = tpu.matmul %78, %79, %cst_20 {dimension_numbers = #tpu.dot_dimension_numbers<[2], [2], [1], [1], [0, 0, 0, 1, 1, 1], [0], [0]>} : vector<1x8x64xbf16>, vector<1x8x64xbf16>, vector<1x8x8xf32> -> vector<1x8x8xf32>
    %cst_21 = arith.constant 0xFF800000 : f32
    %82 = vector.shape_cast %17 : vector<8x8xi1> to vector<1x8x8xi1>
    %83 = vector.broadcast %cst_21 : f32 to vector<1x8x8xf32>
    %84 = arith.select %82, %81, %83 : vector<1x8x8xi1>, vector<1x8x8xf32>
    %cst_22 = arith.constant dense<0xFF800000> : vector<1x8xf32>
    %85 = vector.multi_reduction <maximumf>, %84, %cst_22 [2] : vector<1x8x8xf32> to vector<1x8xf32>
    %86 = vector.shape_cast %85 : vector<1x8xf32> to vector<1x8x1xf32>
    %87 = vector.broadcast %86 : vector<1x8x1xf32> to vector<1x8x8xf32>
    %88 = arith.subf %84, %87 : vector<1x8x8xf32>
    %89 = math.exp %88 : vector<1x8x8xf32>
    %cst_23 = arith.constant dense<0.000000e+00> : vector<1x8xf32>
    %90 = vector.multi_reduction <add>, %89, %cst_23 [2] : vector<1x8x8xf32> to vector<1x8xf32>
    %91 = vector.shape_cast %90 : vector<1x8xf32> to vector<1x8x1xf32>
    %92 = tpu.reciprocal %91 {approx = true} : vector<1x8x1xf32> -> vector<1x8x1xf32>
    %93 = vector.broadcast %92 : vector<1x8x1xf32> to vector<1x8x8xf32>
    %94 = arith.mulf %89, %93 : vector<1x8x8xf32>
    %95 = arith.truncf %94 : vector<1x8x8xf32> to vector<1x8x8xbf16>
    %cst_24 = arith.constant dense<0.000000e+00> : vector<1x8x64xf32>
    %96 = tpu.matmul %95, %80, %cst_24 {dimension_numbers = #tpu.dot_dimension_numbers<[2], [1], [1], [2], [0, 0, 0, 1, 1, 2], [0], [0]>} : vector<1x8x8xbf16>, vector<1x8x64xbf16>, vector<1x8x64xf32> -> vector<1x8x64xf32>
    %97 = arith.truncf %96 : vector<1x8x64xf32> to vector<1x8x64xbf16>
    %98 = vector.extract_strided_slice %11 {offsets = [0, 0, 256], sizes = [1, 8, 64], strides = [1, 1, 1]} : vector<1x8x384xbf16> to vector<1x8x64xbf16>
    %99 = vector.extract_strided_slice %6 {offsets = [0, 0, 256], sizes = [1, 8, 64], strides = [1, 1, 1]} : vector<1x8x384xbf16> to vector<1x8x64xbf16>
    %100 = vector.extract_strided_slice %14 {offsets = [0, 0, 256], sizes = [1, 8, 64], strides = [1, 1, 1]} : vector<1x8x384xbf16> to vector<1x8x64xbf16>
    %cst_25 = arith.constant dense<0.000000e+00> : vector<1x8x8xf32>
    %101 = tpu.matmul %98, %99, %cst_25 {dimension_numbers = #tpu.dot_dimension_numbers<[2], [2], [1], [1], [0, 0, 0, 1, 1, 1], [0], [0]>} : vector<1x8x64xbf16>, vector<1x8x64xbf16>, vector<1x8x8xf32> -> vector<1x8x8xf32>
    %cst_26 = arith.constant 0xFF800000 : f32
    %102 = vector.shape_cast %17 : vector<8x8xi1> to vector<1x8x8xi1>
    %103 = vector.broadcast %cst_26 : f32 to vector<1x8x8xf32>
    %104 = arith.select %102, %101, %103 : vector<1x8x8xi1>, vector<1x8x8xf32>
    %cst_27 = arith.constant dense<0xFF800000> : vector<1x8xf32>
    %105 = vector.multi_reduction <maximumf>, %104, %cst_27 [2] : vector<1x8x8xf32> to vector<1x8xf32>
    %106 = vector.shape_cast %105 : vector<1x8xf32> to vector<1x8x1xf32>
    %107 = vector.broadcast %106 : vector<1x8x1xf32> to vector<1x8x8xf32>
    %108 = arith.subf %104, %107 : vector<1x8x8xf32>
    %109 = math.exp %108 : vector<1x8x8xf32>
    %cst_28 = arith.constant dense<0.000000e+00> : vector<1x8xf32>
    %110 = vector.multi_reduction <add>, %109, %cst_28 [2] : vector<1x8x8xf32> to vector<1x8xf32>
    %111 = vector.shape_cast %110 : vector<1x8xf32> to vector<1x8x1xf32>
    %112 = tpu.reciprocal %111 {approx = true} : vector<1x8x1xf32> -> vector<1x8x1xf32>
    %113 = vector.broadcast %112 : vector<1x8x1xf32> to vector<1x8x8xf32>
    %114 = arith.mulf %109, %113 : vector<1x8x8xf32>
    %115 = arith.truncf %114 : vector<1x8x8xf32> to vector<1x8x8xbf16>
    %cst_29 = arith.constant dense<0.000000e+00> : vector<1x8x64xf32>
    %116 = tpu.matmul %115, %100, %cst_29 {dimension_numbers = #tpu.dot_dimension_numbers<[2], [1], [1], [2], [0, 0, 0, 1, 1, 2], [0], [0]>} : vector<1x8x8xbf16>, vector<1x8x64xbf16>, vector<1x8x64xf32> -> vector<1x8x64xf32>
    %117 = arith.truncf %116 : vector<1x8x64xf32> to vector<1x8x64xbf16>
    %118 = vector.extract_strided_slice %11 {offsets = [0, 0, 320], sizes = [1, 8, 64], strides = [1, 1, 1]} : vector<1x8x384xbf16> to vector<1x8x64xbf16>
    %119 = vector.extract_strided_slice %6 {offsets = [0, 0, 320], sizes = [1, 8, 64], strides = [1, 1, 1]} : vector<1x8x384xbf16> to vector<1x8x64xbf16>
    %120 = vector.extract_strided_slice %14 {offsets = [0, 0, 320], sizes = [1, 8, 64], strides = [1, 1, 1]} : vector<1x8x384xbf16> to vector<1x8x64xbf16>
    %cst_30 = arith.constant dense<0.000000e+00> : vector<1x8x8xf32>
    %121 = tpu.matmul %118, %119, %cst_30 {dimension_numbers = #tpu.dot_dimension_numbers<[2], [2], [1], [1], [0, 0, 0, 1, 1, 1], [0], [0]>} : vector<1x8x64xbf16>, vector<1x8x64xbf16>, vector<1x8x8xf32> -> vector<1x8x8xf32>
    %cst_31 = arith.constant 0xFF800000 : f32
    %122 = vector.shape_cast %17 : vector<8x8xi1> to vector<1x8x8xi1>
    %123 = vector.broadcast %cst_31 : f32 to vector<1x8x8xf32>
    %124 = arith.select %122, %121, %123 : vector<1x8x8xi1>, vector<1x8x8xf32>
    %cst_32 = arith.constant dense<0xFF800000> : vector<1x8xf32>
    %125 = vector.multi_reduction <maximumf>, %124, %cst_32 [2] : vector<1x8x8xf32> to vector<1x8xf32>
    %126 = vector.shape_cast %125 : vector<1x8xf32> to vector<1x8x1xf32>
    %127 = vector.broadcast %126 : vector<1x8x1xf32> to vector<1x8x8xf32>
    %128 = arith.subf %124, %127 : vector<1x8x8xf32>
    %129 = math.exp %128 : vector<1x8x8xf32>
    %cst_33 = arith.constant dense<0.000000e+00> : vector<1x8xf32>
    %130 = vector.multi_reduction <add>, %129, %cst_33 [2] : vector<1x8x8xf32> to vector<1x8xf32>
    %131 = vector.shape_cast %130 : vector<1x8xf32> to vector<1x8x1xf32>
    %132 = tpu.reciprocal %131 {approx = true} : vector<1x8x1xf32> -> vector<1x8x1xf32>
    %133 = vector.broadcast %132 : vector<1x8x1xf32> to vector<1x8x8xf32>
    %134 = arith.mulf %129, %133 : vector<1x8x8xf32>
    %135 = arith.truncf %134 : vector<1x8x8xf32> to vector<1x8x8xbf16>
    %cst_34 = arith.constant dense<0.000000e+00> : vector<1x8x64xf32>
    %136 = tpu.matmul %135, %120, %cst_34 {dimension_numbers = #tpu.dot_dimension_numbers<[2], [1], [1], [2], [0, 0, 0, 1, 1, 2], [0], [0]>} : vector<1x8x8xbf16>, vector<1x8x64xbf16>, vector<1x8x64xf32> -> vector<1x8x64xf32>
    %137 = arith.truncf %136 : vector<1x8x64xf32> to vector<1x8x64xbf16>
    %138 = tpu.concatenate %37, %57, %77, %97, %117, %137 in 2 : vector<1x8x64xbf16>, vector<1x8x64xbf16>, vector<1x8x64xbf16>, vector<1x8x64xbf16>, vector<1x8x64xbf16>, vector<1x8x64xbf16> -> vector<1x8x384xbf16>
    %139 = vector.shape_cast %138 : vector<1x8x384xbf16> to vector<8x384xbf16>
    %c0_35 = arith.constant 0 : index
    %c0_36 = arith.constant 0 : index
    %140 = vector.load %arg3[%c0_35, %c0_36] : memref<384x384xbf16, #tpu.memory_space<vmem>>, vector<384x384xbf16>
    %cst_37 = arith.constant dense<0.000000e+00> : vector<8x384xf32>
    %141 = tpu.matmul %139, %140, %cst_37 {dimension_numbers = #tpu.dot_dimension_numbers<[1], [0], [0], [1], [0, 0, 1, 1], [], []>} : vector<8x384xbf16>, vector<384x384xbf16>, vector<8x384xf32> -> vector<8x384xf32>
    %c0_38 = arith.constant 0 : index
    %c0_39 = arith.constant 0 : index
    %142 = vector.load %arg4[%c0_38, %c0_39] : memref<1x384xf32, #tpu.memory_space<vmem>>, vector<1x384xf32>
    %143 = vector.broadcast %142 : vector<1x384xf32> to vector<8x384xf32>
    %144 = arith.addf %141, %143 : vector<8x384xf32>
    %145 = vector.shape_cast %144 : vector<8x384xf32> to vector<1x8x384xf32>
    %c0_40 = arith.constant 0 : index
    %c0_41 = arith.constant 0 : index
    %c0_42 = arith.constant 0 : index
    %146 = vector.load %arg5[%c0_40, %c0_41, %c0_42] : memref<1x8x384xf32, #tpu.memory_space<vmem>>, vector<1x8x384xf32>
    tpu.vector_store %arg5[%c0_40, %c0_41, %c0_42], %145 {strides = array<i32>} : memref<1x8x384xf32, #tpu.memory_space<vmem>>, vector<1x8x384xf32>,
    return
  }
  func.func @transform_0(%arg0: i32) -> (i32, i32, i32) {
    %c0_i32 = arith.constant 0 : i32
    %c0_i32_0 = arith.constant 0 : i32
    %c0_i32_1 = arith.constant 0 : i32
    return %arg0, %c0_i32, %c0_i32_0 : i32, i32, i32
  }
  func.func @transform_1(%arg0: i32) -> (i32, i32) {
    %c0_i32 = arith.constant 0 : i32
    %c0_i32_0 = arith.constant 0 : i32
    %c0_i32_1 = arith.constant 0 : i32
    return %c0_i32, %c0_i32_0 : i32, i32
  }
  func.func @transform_2(%arg0: i32) -> (i32, i32) {
    %c0_i32 = arith.constant 0 : i32
    %c0_i32_0 = arith.constant 0 : i32
    %c0_i32_1 = arith.constant 0 : i32
    return %c0_i32, %c0_i32_0 : i32, i32
  }
  func.func @transform_3(%arg0: i32) -> (i32, i32) {
    %c0_i32 = arith.constant 0 : i32
    %c0_i32_0 = arith.constant 0 : i32
    %c0_i32_1 = arith.constant 0 : i32
    return %c0_i32, %c0_i32_0 : i32, i32
  }
  func.func @transform_4(%arg0: i32) -> (i32, i32, i32) {
    %c0_i32 = arith.constant 0 : i32
    %c0_i32_0 = arith.constant 0 : i32
    %c0_i32_1 = arith.constant 0 : i32
    return %arg0, %c0_i32, %c0_i32_0 : i32, i32, i32
  }
}

</mosaic_0001>

<llo_original>
// kernel: tpu_custom_call.1
$region0: #{tpu_custom_call.1}
  #allocation0 [shape = 'u32[]', space=smem, size = 0x4, offset = 0x4, fixed_abs, tag = 'smem constant byte address 0x4 - core index']
  #allocation1 [shape = 'u32[72,128]{1,0:T(1,128)}', space=vmem, size = 0x9000, scoped, tag = 'internal scratch']
  %s0 = inlined_call_operand.hbm [shape: bf16[2,8,384], index: 0, kind: input, shape index: {}]
  %s1 = inlined_call_operand.hbm [shape: bf16[384,1152], index: 1, kind: input, shape index: {}]
  %s2 = inlined_call_operand.hbm [shape: bf16[384,384], index: 2, kind: input, shape index: {}]
  %s3 = inlined_call_operand.hbm [shape: f32[1,384], index: 3, kind: input, shape index: {}]
  %s4 = inlined_call_operand.hbm [shape: f32[2,8,384], index: 4, kind: output, shape index: {}]
  %s5 = sld [smem:[#allocation0]]
  $region65: #{tpu_custom_call.1} parent=0
    _
  %s7 = ssub.s32 1, %s5
  %s8 = scalar_select 0, %s7, %s5
  $region1: #{tpu_custom_call.1} parent=0
    #allocation2 [shape = 'u8[12288]{0}', space=vmem, size = 0x3000, scoped, tag = 'input window, operand 0']
    #allocation3 [shape = 's32[2]{0}', space=sflag, size = 0x8, scoped, tag = 'scoped memory for tpu_custom_call.1']
    #allocation4 [shape = 's32[2]{0}', space=sflag, size = 0x8, scoped, tag = 'scoped memory for tpu_custom_call.1']
    #allocation5 [shape = 'u8[884736]{0}', space=vmem, size = 0xd8000, scoped, tag = 'input window, operand 1, single buffered']
    #allocation6 [shape = 's32[1]{0}', space=sflag, size = 0x4, scoped, tag = 'scoped memory for tpu_custom_call.1']
    #allocation7 [shape = 'u8[294912]{0}', space=vmem, size = 0x48000, scoped, tag = 'input window, operand 2, single buffered']
    #allocation8 [shape = 'u8[1536]{0}', space=vmem, size = 0x800, scoped, tag = 'input window, operand 3, single buffered']
    #allocation9 [shape = 's32[1]{0}', space=sflag, size = 0x4, scoped, tag = 'scoped memory for tpu_custom_call.1']
    #allocation10 [shape = 'u8[24576]{0}', space=vmem, size = 0x6000, scoped, tag = 'output window, operand 0']
    %9 = vsyncpa [#allocation3], 0
    %s10 = scalar_lea.sflag [#allocation3], 1
    %11 = vsyncpa %s10, 0
    %12 = vsyncpa [#allocation6], 0
    %13 = vsyncpa [#allocation9], 0
    %14 = vsyncpa [#allocation4], 0
    %s15 = scalar_lea.sflag [#allocation4], 1
    %16 = vsyncpa %s15, 0
    loop: start=0, step=1, limit=4
    $region2: #{tpu_custom_call.1} parent=1 // loop_pre_header
      _
    $region3: #{tpu_custom_call.1} parent=1 // loop_header
      %s18 = sphi 0, %s22
      %p19 = scmp.ge.s32.totalorder %s18, 4
      %s28 = sphi 0, %s30
      %s31 = sphi 0, %s28
      %s32 = sphi 0, %s31
      %s48 = sphi 0, %s32
      %s52 = sphi 0, %s52
      %s54 = sphi 0, %s52
      %s55 = sphi 0, %s54
      %s69 = sphi 0, %s55
      %s73 = sphi 0, %s73
      %s75 = sphi 0, %s73
      %s76 = sphi 0, %s75
      %s90 = sphi 0, %s76
      %s94 = sphi 0, %s94
      %s96 = sphi 0, %s94
      %s97 = sphi 0, %s96
      %s111 = sphi 0, %s97
      %s117 = sphi 0, %s119
      %s120 = sphi 0, %s117
      %s121 = sphi 0, %s120
      %s137 = sphi 0, %s121
    $region4: #{tpu_custom_call.1} parent=1 // loop_header_branch
      %21 = sbr.rel (%p19) target = $region8
    $region5: #{tpu_custom_call.1} parent=1 // loop_body
      %s23 = ssub.s32 %s18, 1
      %s24 = ssub.s32 %s18, 2
      %s25 = sadd.s32 %s18, 1
      %s26 = ssub.s32 %s18, %s25
      %p27 = scmp.eq.s32.totalorder %s26, 0
      %s29 = sadd.s32 %s28, 1
      %s30 = scalar_select %p27, %s28, %s29
      %p33 = pneg %p27
      %p34 = scmp.eq.s32.totalorder %s18, 1
      %p35 = por %p33, %p34
      %p36 = scmp.ne.s32.totalorder %s28, %s31
      %p37 = scmp.eq.s32.totalorder %s18, 0
      %p38 = por %p36, %p37
      %p39 = scmp.ne.s32.totalorder %s28, %s31
      %p40 = scmp.eq.s32.totalorder %s23, 1
      %p41 = por %p39, %p40
      %p42 = scmp.ne.s32.totalorder %s31, %s32
      %p43 = scmp.eq.s32.totalorder %s23, 0
      %p44 = por %p42, %p43
      %p45 = scmp.ne.s32.totalorder %s31, %s32
      %p46 = scmp.eq.s32.totalorder %s24, 1
      %p47 = por %p45, %p46
      %p49 = scmp.ne.s32.totalorder %s32, %s48
      %p50 = scmp.eq.s32.totalorder %s24, 0
      %p51 = por %p49, %p50
      %s53 = sadd.s32 %s52, 1
      %p56 = scmp.eq.s32.totalorder %s18, 1
      %p57 = scmp.ne.s32.totalorder %s52, %s54
      %p58 = scmp.eq.s32.totalorder %s18, 0
      %p59 = por %p57, %p58
      %p60 = scmp.ne.s32.totalorder %s52, %s54
      %p61 = scmp.eq.s32.totalorder %s23, 1
      %p62 = por %p60, %p61
      %p63 = scmp.ne.s32.totalorder %s54, %s55
      %p64 = scmp.eq.s32.totalorder %s23, 0
      %p65 = por %p63, %p64
      %p66 = scmp.ne.s32.totalorder %s54, %s55
      %p67 = scmp.eq.s32.totalorder %s24, 1
      %p68 = por %p66, %p67
      %p70 = scmp.ne.s32.totalorder %s55, %s69
      %p71 = scmp.eq.s32.totalorder %s24, 0
      %p72 = por %p70, %p71
      %s74 = sadd.s32 %s73, 1
      %p77 = scmp.eq.s32.totalorder %s18, 1
      %p78 = scmp.ne.s32.totalorder %s73, %s75
      %p79 = scmp.eq.s32.totalorder %s18, 0
      %p80 = por %p78, %p79
      %p81 = scmp.ne.s32.totalorder %s73, %s75
      %p82 = scmp.eq.s32.totalorder %s23, 1
      %p83 = por %p81, %p82
      %p84 = scmp.ne.s32.totalorder %s75, %s76
      %p85 = scmp.eq.s32.totalorder %s23, 0
      %p86 = por %p84, %p85
      %p87 = scmp.ne.s32.totalorder %s75, %s76
      %p88 = scmp.eq.s32.totalorder %s24, 1
      %p89 = por %p87, %p88
      %p91 = scmp.ne.s32.totalorder %s76, %s90
      %p92 = scmp.eq.s32.totalorder %s24, 0
      %p93 = por %p91, %p92
      %s95 = sadd.s32 %s94, 1
      %p98 = scmp.eq.s32.totalorder %s18, 1
      %p99 = scmp.ne.s32.totalorder %s94, %s96
      %p100 = scmp.eq.s32.totalorder %s18, 0
      %p101 = por %p99, %p100
      %p102 = scmp.ne.s32.totalorder %s94, %s96
      %p103 = scmp.eq.s32.totalorder %s23, 1
      %p104 = por %p102, %p103
      %p105 = scmp.ne.s32.totalorder %s96, %s97
      %p106 = scmp.eq.s32.totalorder %s23, 0
      %p107 = por %p105, %p106
      %p108 = scmp.ne.s32.totalorder %s96, %s97
      %p109 = scmp.eq.s32.totalorder %s24, 1
      %p110 = por %p108, %p109
      %p112 = scmp.ne.s32.totalorder %s97, %s111
      %p113 = scmp.eq.s32.totalorder %s24, 0
      %p114 = por %p112, %p113
      %s115 = ssub.s32 %s18, %s25
      %p116 = scmp.eq.s32.totalorder %s115, 0
      %s118 = sadd.s32 %s117, 1
      %s119 = scalar_select %p116, %s117, %s118
      %p122 = pneg %p116
      %p123 = scmp.eq.s32.totalorder %s18, 1
      %p124 = por %p122, %p123
      %p125 = scmp.ne.s32.totalorder %s117, %s120
      %p126 = scmp.eq.s32.totalorder %s18, 0
      %p127 = por %p125, %p126
      %p128 = scmp.ne.s32.totalorder %s117, %s120
      %p129 = scmp.eq.s32.totalorder %s23, 1
      %p130 = por %p128, %p129
      %p131 = scmp.ne.s32.totalorder %s120, %s121
      %p132 = scmp.eq.s32.totalorder %s23, 0
      %p133 = por %p131, %p132
      %p134 = scmp.ne.s32.totalorder %s120, %s121
      %p135 = scmp.eq.s32.totalorder %s24, 1
      %p136 = por %p134, %p135
      %p138 = scmp.ne.s32.totalorder %s121, %s137
      %p139 = scmp.eq.s32.totalorder %s24, 0
      %p140 = por %p138, %p139
      %p141 = scmp.le.s32.totalorder 1, %s18
      %p142 = scmp.lt.s32.totalorder %s18, 3
      %p143 = pnand %p141, %p142
      %p144 = pneg %p143
      // Predicated region
      $region9: #{tpu_custom_call.1} parent=5 // pred_check
        _
      $region10: #{tpu_custom_call.1} parent=5 // pred_check_branch
        %146 = sbr.rel (%p143) target = $region12
      $region11: #{tpu_custom_call.1} parent=5 // pred_region
        %s147 = ssub.s32 %s18, 1
        // Predicated region
        $region13: #{tpu_custom_call.1} parent=11 // pred_check
          %p148 = pneg %p65
        $region14: #{tpu_custom_call.1} parent=11 // pred_check_branch
          %150 = sbr.rel (%p148) target = $region16
        $region15: #{tpu_custom_call.1} parent=11 // pred_region
          %152 = vsyncadd [#allocation6], 0
          %s153 = sshll.u32 %s1, 4
          %s154 = int_to_ptr.hbm [resolvable:$true] %s153
          %s155 = sshll.u32 [#allocation5], 4
          %s156 = int_to_ptr.vmem [resolvable:$true] %s155
          %161 = dma.hbm_to_vmem [thread:$0]  %s154, 27648, %s156, [#allocation6], 576, 576, 36
        $region16: #{tpu_custom_call.1} parent=11 // pred_fallthru
          _
        // Predicated region
        $region17: #{tpu_custom_call.1} parent=11 // pred_check
          %p162 = pneg %p86
        $region18: #{tpu_custom_call.1} parent=11 // pred_check_branch
          %164 = sbr.rel (%p162) target = $region20
        $region19: #{tpu_custom_call.1} parent=11 // pred_region
          %166 = vsyncadd [#allocation6], 0
          %s167 = sshll.u32 %s2, 4
          %s168 = int_to_ptr.hbm [resolvable:$true] %s167
          %s169 = sshll.u32 [#allocation7], 4
          %s170 = int_to_ptr.vmem [resolvable:$true] %s169
          %175 = dma.hbm_to_vmem [thread:$0]  %s168, 9216, %s170, [#allocation6], 192, 192, 12
        $region20: #{tpu_custom_call.1} parent=11 // pred_fallthru
          _
        // Predicated region
        $region21: #{tpu_custom_call.1} parent=11 // pred_check
          %p176 = pneg %p107
        $region22: #{tpu_custom_call.1} parent=11 // pred_check_branch
          %178 = sbr.rel (%p176) target = $region24
        $region23: #{tpu_custom_call.1} parent=11 // pred_region
          %180 = vsyncadd [#allocation9], 0
          %s182 = sshll.u32 %s3, 4
          %s183 = int_to_ptr.hbm [resolvable:$true] %s182
          %s184 = sshll.u32 [#allocation8], 4
          %s185 = int_to_ptr.vmem [resolvable:$true] %s184
          %187 = dma.hbm_to_vmem [thread:$0]  %s183, 48, %s185, [#allocation9]
        $region24: #{tpu_custom_call.1} parent=11 // pred_fallthru
          _
      $region12: #{tpu_custom_call.1} parent=5 // pred_fallthru
        _
      %p188 = scmp.lt.s32.totalorder %s18, 2
      // Predicated region
      $region25: #{tpu_custom_call.1} parent=5 // pred_check
        %p189 = pneg %p188
      $region26: #{tpu_custom_call.1} parent=5 // pred_check_branch
        %191 = sbr.rel (%p189) target = $region28
      $region27: #{tpu_custom_call.1} parent=5 // pred_region
        // Predicated region
        $region29: #{tpu_custom_call.1} parent=27 // pred_check
          %p192 = pneg %p38
        $region30: #{tpu_custom_call.1} parent=27 // pred_check_branch
          %194 = sbr.rel (%p192) target = $region32
        $region31: #{tpu_custom_call.1} parent=27 // pred_region
          %s195 = sand.u32 %s28, 1
          %s196 = scalar_lea.sflag [#allocation3], %s195
          %s197 = sand.u32 %s28, 1
          %s198 = smul.addr %s197, 12
          %s199 = scalar_lea.vmem [#allocation2], %s198
          %201 = vsyncadd %s196, 0
          %s202 = smul.addr %s18, 3
          %s203 = smul.addr %s202, 4
          %s204 = scalar_lea.hbm %s0, %s203
          %s206 = sshll.u32 %s204, 4
          %s207 = int_to_ptr.hbm [resolvable:$true] %s206
          %s208 = sshll.u32 %s199, 4
          %s209 = int_to_ptr.vmem [resolvable:$true] %s208
          %211 = dma.hbm_to_vmem [thread:$0]  %s207, 192, %s209, %s196
        $region32: #{tpu_custom_call.1} parent=27 // pred_fallthru
          _
      $region28: #{tpu_custom_call.1} parent=5 // pred_fallthru
        _
      %p212 = scmp.le.s32.totalorder 1, %s18
      %p213 = scmp.lt.s32.totalorder %s18, 3
      %p214 = pnand %p212, %p213
      %p215 = pneg %p214
      // Predicated region
      $region33: #{tpu_custom_call.1} parent=5 // pred_check
        _
      $region34: #{tpu_custom_call.1} parent=5 // pred_check_branch
        %217 = sbr.rel (%p214) target = $region36
      $region35: #{tpu_custom_call.1} parent=5 // pred_region
        %s218 = ssub.s32 %s18, 1
        %s219 = sand.u32 %s31, 1
        %s220 = scalar_lea.sflag [#allocation3], %s219
        %s221 = sand.u32 %s31, 1
        %s222 = smul.addr %s221, 12
        %s223 = scalar_lea.vmem [#allocation2], %s222
        // Predicated region
        $region37: #{tpu_custom_call.1} parent=35 // pred_check
          %p224 = pneg %p44
        $region38: #{tpu_custom_call.1} parent=35 // pred_check_branch
          %226 = sbr.rel (%p224) target = $region40
        $region39: #{tpu_custom_call.1} parent=35 // pred_region
          %228 = dma.done %s220, 192
        $region40: #{tpu_custom_call.1} parent=35 // pred_fallthru
          _
        // Predicated region
        $region41: #{tpu_custom_call.1} parent=35 // pred_check
          %p229 = pneg %p65
        $region42: #{tpu_custom_call.1} parent=35 // pred_check_branch
          %231 = sbr.rel (%p229) target = $region44
        $region43: #{tpu_custom_call.1} parent=35 // pred_region
          %233 = dma.done [#allocation6], 27648
        $region44: #{tpu_custom_call.1} parent=35 // pred_fallthru
          _
        // Predicated region
        $region45: #{tpu_custom_call.1} parent=35 // pred_check
          %p234 = pneg %p86
        $region46: #{tpu_custom_call.1} parent=35 // pred_check_branch
          %236 = sbr.rel (%p234) target = $region48
        $region47: #{tpu_custom_call.1} parent=35 // pred_region
          %238 = dma.done [#allocation6], 9216
        $region48: #{tpu_custom_call.1} parent=35 // pred_fallthru
          _
        // Predicated region
        $region49: #{tpu_custom_call.1} parent=35 // pred_check
          %p239 = pneg %p107
        $region50: #{tpu_custom_call.1} parent=35 // pred_check_branch
          %241 = sbr.rel (%p239) target = $region52
        $region51: #{tpu_custom_call.1} parent=35 // pred_region
          %243 = dma.done [#allocation9], 48
        $region52: #{tpu_custom_call.1} parent=35 // pred_fallthru
          _
        %s244 = sand.u32 %s31, 1
        %s245 = scalar_lea.sflag [#allocation3], %s244
        %s246 = sand.u32 %s31, 1
        %s247 = smul.addr %s246, 12
        %s248 = scalar_lea.vmem [#allocation2], %s247
        %p249 = pneg %p44
        %p250 = pneg %p41
        %p251 = pneg %p65
        %p252 = pneg %p62
        %p253 = pneg %p86
        %p254 = pneg %p83
        %p255 = pneg %p107
        %p256 = pneg %p104
        %p257 = pneg %p133
        %p258 = pneg %p130
        %s259 = sand.u32 %s120, 1
        %s260 = scalar_lea.sflag [#allocation4], %s259
        %s261 = sand.u32 %s120, 1
        %s262 = smul.addr %s261, 24
        %s263 = scalar_lea.vmem [#allocation10], %s262
        %v265 = vld [vmem:[%s223] sm:$0xff]
        %v266 = vld [vmem:[%s223 + $0x8] sm:$0xf]
        %v267 = vld [vmem:[#allocation5] sm:$0xff]
        %v268 = vld [vmem:[#allocation5 + $0x8] sm:$0xff]
        %v269 = vld [vmem:[#allocation5 + $0x10] sm:$0xff]
        %v270 = vld [vmem:[#allocation5 + $0x18] sm:$0xff]
        %v271 = vld [vmem:[#allocation5 + $0x20] sm:$0xf]
        %v272 = vld [vmem:[#allocation5 + $0x24] sm:$0xff]
        %v273 = vld [vmem:[#allocation5 + $0x2c] sm:$0xff]
        %v274 = vld [vmem:[#allocation5 + $0x34] sm:$0xff]
        %v275 = vld [vmem:[#allocation5 + $0x3c] sm:$0xff]
        %v276 = vld [vmem:[#allocation5 + $0x44] sm:$0xf]
        %v277 = vld [vmem:[#allocation5 + $0x48] sm:$0xff]
        %v278 = vld [vmem:[#allocation5 + $0x50] sm:$0xff]
        %v279 = vld [vmem:[#allocation5 + $0x58] sm:$0xff]
        %v280 = vld [vmem:[#allocation5 + $0x60] sm:$0xff]
        %v281 = vld [vmem:[#allocation5 + $0x68] sm:$0xf]
        %v282 = vld [vmem:[#allocation5 + $0x6c] sm:$0xff]
        %v283 = vld [vmem:[#allocation5 + $0x74] sm:$0xff]
        %v284 = vld [vmem:[#allocation5 + $0x7c] sm:$0xff]
        %v285 = vld [vmem:[#allocation5 + $0x84] sm:$0xff]
        %v286 = vld [vmem:[#allocation5 + $0x8c] sm:$0xf]
        %v287 = vld [vmem:[#allocation5 + $0x90] sm:$0xff]
        %v288 = vld [vmem:[#allocation5 + $0x98] sm:$0xff]
        %v289 = vld [vmem:[#allocation5 + $0xa0] sm:$0xff]
        %v290 = vld [vmem:[#allocation5 + $0xa8] sm:$0xff]
        %v291 = vld [vmem:[#allocation5 + $0xb0] sm:$0xf]
        %v292 = vld [vmem:[#allocation5 + $0xb4] sm:$0xff]
        %v293 = vld [vmem:[#allocation5 + $0xbc] sm:$0xff]
        %v294 = vld [vmem:[#allocation5 + $0xc4] sm:$0xff]
        %v295 = vld [vmem:[#allocation5 + $0xcc] sm:$0xff]
        %v296 = vld [vmem:[#allocation5 + $0xd4] sm:$0xf]
        %v297 = vld [vmem:[#allocation5 + $0xd8] sm:$0xff]
        %v298 = vld [vmem:[#allocation5 + $0xe0] sm:$0xff]
        %v299 = vld [vmem:[#allocation5 + $0xe8] sm:$0xff]
        %v300 = vld [vmem:[#allocation5 + $0xf0] sm:$0xff]
        %v301 = vld [vmem:[#allocation5 + $0xf8] sm:$0xf]
        %v302 = vld [vmem:[#allocation5 + $0xfc] sm:$0xff]
        %v303 = vld [vmem:[#allocation5 + $0x104] sm:$0xff]
        %v304 = vld [vmem:[#allocation5 + $0x10c] sm:$0xff]
        %v305 = vld [vmem:[#allocation5 + $0x114] sm:$0xff]
        %v306 = vld [vmem:[#allocation5 + $0x11c] sm:$0xf]
        %v307 = vld [vmem:[#allocation5 + $0x120] sm:$0xff]
        %v308 = vld [vmem:[#allocation5 + $0x128] sm:$0xff]
        %v309 = vld [vmem:[#allocation5 + $0x130] sm:$0xff]
        %v310 = vld [vmem:[#allocation5 + $0x138] sm:$0xff]
        %v311 = vld [vmem:[#allocation5 + $0x140] sm:$0xf]
        %v312 = vld [vmem:[#allocation5 + $0x144] sm:$0xff]
        %v313 = vld [vmem:[#allocation5 + $0x14c] sm:$0xff]
        %v314 = vld [vmem:[#allocation5 + $0x154] sm:$0xff]
        %v315 = vld [vmem:[#allocation5 + $0x15c] sm:$0xff]
        %v316 = vld [vmem:[#allocation5 + $0x164] sm:$0xf]
        %v317 = vld [vmem:[#allocation5 + $0x168] sm:$0xff]
        %v318 = vld [vmem:[#allocation5 + $0x170] sm:$0xff]
        %v319 = vld [vmem:[#allocation5 + $0x178] sm:$0xff]
        %v320 = vld [vmem:[#allocation5 + $0x180] sm:$0xff]
        %v321 = vld [vmem:[#allocation5 + $0x188] sm:$0xf]
        %v322 = vld [vmem:[#allocation5 + $0x18c] sm:$0xff]
        %v323 = vld [vmem:[#allocation5 + $0x194] sm:$0xff]
        %v324 = vld [vmem:[#allocation5 + $0x19c] sm:$0xff]
        %v325 = vld [vmem:[#allocation5 + $0x1a4] sm:$0xff]
        %v326 = vld [vmem:[#allocation5 + $0x1ac] sm:$0xf]
        %v327 = vld [vmem:[#allocation5 + $0x1b0] sm:$0xff]
        %v328 = vld [vmem:[#allocation5 + $0x1b8] sm:$0xff]
        %v329 = vld [vmem:[#allocation5 + $0x1c0] sm:$0xff]
        %v330 = vld [vmem:[#allocation5 + $0x1c8] sm:$0xff]
        %v331 = vld [vmem:[#allocation5 + $0x1d0] sm:$0xf]
        %v332 = vld [vmem:[#allocation5 + $0x1d4] sm:$0xff]
        %v333 = vld [vmem:[#allocation5 + $0x1dc] sm:$0xff]
        %v334 = vld [vmem:[#allocation5 + $0x1e4] sm:$0xff]
        %v335 = vld [vmem:[#allocation5 + $0x1ec] sm:$0xff]
        %v336 = vld [vmem:[#allocation5 + $0x1f4] sm:$0xf]
        %v337 = vld [vmem:[#allocation5 + $0x1f8] sm:$0xff]
        %v338 = vld [vmem:[#allocation5 + $0x200] sm:$0xff]
        %v339 = vld [vmem:[#allocation5 + $0x208] sm:$0xff]
        %v340 = vld [vmem:[#allocation5 + $0x210] sm:$0xff]
        %v341 = vld [vmem:[#allocation5 + $0x218] sm:$0xf]
        %v342 = vld [vmem:[#allocation5 + $0x21c] sm:$0xff]
        %v343 = vld [vmem:[#allocation5 + $0x224] sm:$0xff]
        %v344 = vld [vmem:[#allocation5 + $0x22c] sm:$0xff]
        %v345 = vld [vmem:[#allocation5 + $0x234] sm:$0xff]
        %v346 = vld [vmem:[#allocation5 + $0x23c] sm:$0xf]
        %v347 = vld [vmem:[#allocation5 + $0x240] sm:$0xff]
        %v348 = vld [vmem:[#allocation5 + $0x248] sm:$0xff]
        %v349 = vld [vmem:[#allocation5 + $0x250] sm:$0xff]
        %v350 = vld [vmem:[#allocation5 + $0x258] sm:$0xff]
        %v351 = vld [vmem:[#allocation5 + $0x260] sm:$0xf]
        %v352 = vld [vmem:[#allocation5 + $0x264] sm:$0xff]
        %v353 = vld [vmem:[#allocation5 + $0x26c] sm:$0xff]
        %v354 = vld [vmem:[#allocation5 + $0x274] sm:$0xff]
        %v355 = vld [vmem:[#allocation5 + $0x27c] sm:$0xff]
        %v356 = vld [vmem:[#allocation5 + $0x284] sm:$0xf]
        %v357 = vld [vmem:[#allocation5 + $0x288] sm:$0xff]
        %v358 = vld [vmem:[#allocation5 + $0x290] sm:$0xff]
        %v359 = vld [vmem:[#allocation5 + $0x298] sm:$0xff]
        %v360 = vld [vmem:[#allocation5 + $0x2a0] sm:$0xff]
        %v361 = vld [vmem:[#allocation5 + $0x2a8] sm:$0xf]
        %v362 = vld [vmem:[#allocation5 + $0x2ac] sm:$0xff]
        %v363 = vld [vmem:[#allocation5 + $0x2b4] sm:$0xff]
        %v364 = vld [vmem:[#allocation5 + $0x2bc] sm:$0xff]
        %v365 = vld [vmem:[#allocation5 + $0x2c4] sm:$0xff]
        %v366 = vld [vmem:[#allocation5 + $0x2cc] sm:$0xf]
        %v367 = vld [vmem:[#allocation5 + $0x2d0] sm:$0xff]
        %v368 = vld [vmem:[#allocation5 + $0x2d8] sm:$0xff]
        %v369 = vld [vmem:[#allocation5 + $0x2e0] sm:$0xff]
        %v370 = vld [vmem:[#allocation5 + $0x2e8] sm:$0xff]
        %v371 = vld [vmem:[#allocation5 + $0x2f0] sm:$0xf]
        %v372 = vld [vmem:[#allocation5 + $0x2f4] sm:$0xff]
        %v373 = vld [vmem:[#allocation5 + $0x2fc] sm:$0xff]
        %v374 = vld [vmem:[#allocation5 + $0x304] sm:$0xff]
        %v375 = vld [vmem:[#allocation5 + $0x30c] sm:$0xff]
        %v376 = vld [vmem:[#allocation5 + $0x314] sm:$0xf]
        %v377 = vld [vmem:[#allocation5 + $0x318] sm:$0xff]
        %v378 = vld [vmem:[#allocation5 + $0x320] sm:$0xff]
        %v379 = vld [vmem:[#allocation5 + $0x328] sm:$0xff]
        %v380 = vld [vmem:[#allocation5 + $0x330] sm:$0xff]
        %v381 = vld [vmem:[#allocation5 + $0x338] sm:$0xf]
        %v382 = vld [vmem:[#allocation5 + $0x33c] sm:$0xff]
        %v383 = vld [vmem:[#allocation5 + $0x344] sm:$0xff]
        %v384 = vld [vmem:[#allocation5 + $0x34c] sm:$0xff]
        %v385 = vld [vmem:[#allocation5 + $0x354] sm:$0xff]
        %v386 = vld [vmem:[#allocation5 + $0x35c] sm:$0xf]
        %v387 = vld [vmem:[#allocation5 + $0x360] sm:$0xff]
        %v388 = vld [vmem:[#allocation5 + $0x368] sm:$0xff]
        %v389 = vld [vmem:[#allocation5 + $0x370] sm:$0xff]
        %v390 = vld [vmem:[#allocation5 + $0x378] sm:$0xff]
        %v391 = vld [vmem:[#allocation5 + $0x380] sm:$0xf]
        %v392 = vld [vmem:[#allocation5 + $0x384] sm:$0xff]
        %v393 = vld [vmem:[#allocation5 + $0x38c] sm:$0xff]
        %v394 = vld [vmem:[#allocation5 + $0x394] sm:$0xff]
        %v395 = vld [vmem:[#allocation5 + $0x39c] sm:$0xff]
        %v396 = vld [vmem:[#allocation5 + $0x3a4] sm:$0xf]
        %v397 = vld [vmem:[#allocation5 + $0x3a8] sm:$0xff]
        %v398 = vld [vmem:[#allocation5 + $0x3b0] sm:$0xff]
        %v399 = vld [vmem:[#allocation5 + $0x3b8] sm:$0xff]
        %v400 = vld [vmem:[#allocation5 + $0x3c0] sm:$0xff]
        %v401 = vld [vmem:[#allocation5 + $0x3c8] sm:$0xf]
        %v402 = vld [vmem:[#allocation5 + $0x3cc] sm:$0xff]
        %v403 = vld [vmem:[#allocation5 + $0x3d4] sm:$0xff]
        %v404 = vld [vmem:[#allocation5 + $0x3dc] sm:$0xff]
        %v405 = vld [vmem:[#allocation5 + $0x3e4] sm:$0xff]
        %v406 = vld [vmem:[#allocation5 + $0x3ec] sm:$0xf]
        %v407 = vld [vmem:[#allocation5 + $0x3f0] sm:$0xff]
        %v408 = vld [vmem:[#allocation5 + $0x3f8] sm:$0xff]
        %v409 = vld [vmem:[#allocation5 + $0x400] sm:$0xff]
        %v410 = vld [vmem:[#allocation5 + $0x408] sm:$0xff]
        %v411 = vld [vmem:[#allocation5 + $0x410] sm:$0xf]
        %v412 = vld [vmem:[#allocation5 + $0x414] sm:$0xff]
        %v413 = vld [vmem:[#allocation5 + $0x41c] sm:$0xff]
        %v414 = vld [vmem:[#allocation5 + $0x424] sm:$0xff]
        %v415 = vld [vmem:[#allocation5 + $0x42c] sm:$0xff]
        %v416 = vld [vmem:[#allocation5 + $0x434] sm:$0xf]
        %v417 = vld [vmem:[#allocation5 + $0x438] sm:$0xff]
        %v418 = vld [vmem:[#allocation5 + $0x440] sm:$0xff]
        %v419 = vld [vmem:[#allocation5 + $0x448] sm:$0xff]
        %v420 = vld [vmem:[#allocation5 + $0x450] sm:$0xff]
        %v421 = vld [vmem:[#allocation5 + $0x458] sm:$0xf]
        %v422 = vld [vmem:[#allocation5 + $0x45c] sm:$0xff]
        %v423 = vld [vmem:[#allocation5 + $0x464] sm:$0xff]
        %v424 = vld [vmem:[#allocation5 + $0x46c] sm:$0xff]
        %v425 = vld [vmem:[#allocation5 + $0x474] sm:$0xff]
        %v426 = vld [vmem:[#allocation5 + $0x47c] sm:$0xf]
        %v427 = vld [vmem:[#allocation5 + $0x480] sm:$0xff]
        %v428 = vld [vmem:[#allocation5 + $0x488] sm:$0xff]
        %v429 = vld [vmem:[#allocation5 + $0x490] sm:$0xff]
        %v430 = vld [vmem:[#allocation5 + $0x498] sm:$0xff]
        %v431 = vld [vmem:[#allocation5 + $0x4a0] sm:$0xf]
        %v432 = vld [vmem:[#allocation5 + $0x4a4] sm:$0xff]
        %v433 = vld [vmem:[#allocation5 + $0x4ac] sm:$0xff]
        %v434 = vld [vmem:[#allocation5 + $0x4b4] sm:$0xff]
        %v435 = vld [vmem:[#allocation5 + $0x4bc] sm:$0xff]
        %v436 = vld [vmem:[#allocation5 + $0x4c4] sm:$0xf]
        %v437 = vld [vmem:[#allocation5 + $0x4c8] sm:$0xff]
        %v438 = vld [vmem:[#allocation5 + $0x4d0] sm:$0xff]
        %v439 = vld [vmem:[#allocation5 + $0x4d8] sm:$0xff]
        %v440 = vld [vmem:[#allocation5 + $0x4e0] sm:$0xff]
        %v441 = vld [vmem:[#allocation5 + $0x4e8] sm:$0xf]
        %v442 = vld [vmem:[#allocation5 + $0x4ec] sm:$0xff]
        %v443 = vld [vmem:[#allocation5 + $0x4f4] sm:$0xff]
        %v444 = vld [vmem:[#allocation5 + $0x4fc] sm:$0xff]
        %v445 = vld [vmem:[#allocation5 + $0x504] sm:$0xff]
        %v446 = vld [vmem:[#allocation5 + $0x50c] sm:$0xf]
        %v447 = vld [vmem:[#allocation5 + $0x510] sm:$0xff]
        %v448 = vld [vmem:[#allocation5 + $0x518] sm:$0xff]
        %v449 = vld [vmem:[#allocation5 + $0x520] sm:$0xff]
        %v450 = vld [vmem:[#allocation5 + $0x528] sm:$0xff]
        %v451 = vld [vmem:[#allocation5 + $0x530] sm:$0xf]
        %v452 = vld [vmem:[#allocation5 + $0x534] sm:$0xff]
        %v453 = vld [vmem:[#allocation5 + $0x53c] sm:$0xff]
        %v454 = vld [vmem:[#allocation5 + $0x544] sm:$0xff]
        %v455 = vld [vmem:[#allocation5 + $0x54c] sm:$0xff]
        %v456 = vld [vmem:[#allocation5 + $0x554] sm:$0xf]
        %v457 = vld [vmem:[#allocation5 + $0x558] sm:$0xff]
        %v458 = vld [vmem:[#allocation5 + $0x560] sm:$0xff]
        %v459 = vld [vmem:[#allocation5 + $0x568] sm:$0xff]
        %v460 = vld [vmem:[#allocation5 + $0x570] sm:$0xff]
        %v461 = vld [vmem:[#allocation5 + $0x578] sm:$0xf]
        %v462 = vld [vmem:[#allocation5 + $0x57c] sm:$0xff]
        %v463 = vld [vmem:[#allocation5 + $0x584] sm:$0xff]
        %v464 = vld [vmem:[#allocation5 + $0x58c] sm:$0xff]
        %v465 = vld [vmem:[#allocation5 + $0x594] sm:$0xff]
        %v466 = vld [vmem:[#allocation5 + $0x59c] sm:$0xf]
        %v467 = vld [vmem:[#allocation5 + $0x5a0] sm:$0xff]
        %v468 = vld [vmem:[#allocation5 + $0x5a8] sm:$0xff]
        %v469 = vld [vmem:[#allocation5 + $0x5b0] sm:$0xff]
        %v470 = vld [vmem:[#allocation5 + $0x5b8] sm:$0xff]
        %v471 = vld [vmem:[#allocation5 + $0x5c0] sm:$0xf]
        %v472 = vld [vmem:[#allocation5 + $0x5c4] sm:$0xff]
        %v473 = vld [vmem:[#allocation5 + $0x5cc] sm:$0xff]
        %v474 = vld [vmem:[#allocation5 + $0x5d4] sm:$0xff]
        %v475 = vld [vmem:[#allocation5 + $0x5dc] sm:$0xff]
        %v476 = vld [vmem:[#allocation5 + $0x5e4] sm:$0xf]
        %v477 = vld [vmem:[#allocation5 + $0x5e8] sm:$0xff]
        %v478 = vld [vmem:[#allocation5 + $0x5f0] sm:$0xff]
        %v479 = vld [vmem:[#allocation5 + $0x5f8] sm:$0xff]
        %v480 = vld [vmem:[#allocation5 + $0x600] sm:$0xff]
        %v481 = vld [vmem:[#allocation5 + $0x608] sm:$0xf]
        %v482 = vld [vmem:[#allocation5 + $0x60c] sm:$0xff]
        %v483 = vld [vmem:[#allocation5 + $0x614] sm:$0xff]
        %v484 = vld [vmem:[#allocation5 + $0x61c] sm:$0xff]
        %v485 = vld [vmem:[#allocation5 + $0x624] sm:$0xff]
        %v486 = vld [vmem:[#allocation5 + $0x62c] sm:$0xf]
        %v487 = vld [vmem:[#allocation5 + $0x630] sm:$0xff]
        %v488 = vld [vmem:[#allocation5 + $0x638] sm:$0xff]
        %v489 = vld [vmem:[#allocation5 + $0x640] sm:$0xff]
        %v490 = vld [vmem:[#allocation5 + $0x648] sm:$0xff]
        %v491 = vld [vmem:[#allocation5 + $0x650] sm:$0xf]
        %v492 = vld [vmem:[#allocation5 + $0x654] sm:$0xff]
        %v493 = vld [vmem:[#allocation5 + $0x65c] sm:$0xff]
        %v494 = vld [vmem:[#allocation5 + $0x664] sm:$0xff]
        %v495 = vld [vmem:[#allocation5 + $0x66c] sm:$0xff]
        %v496 = vld [vmem:[#allocation5 + $0x674] sm:$0xf]
        %v497 = vld [vmem:[#allocation5 + $0x678] sm:$0xff]
        %v498 = vld [vmem:[#allocation5 + $0x680] sm:$0xff]
        %v499 = vld [vmem:[#allocation5 + $0x688] sm:$0xff]
        %v500 = vld [vmem:[#allocation5 + $0x690] sm:$0xff]
        %v501 = vld [vmem:[#allocation5 + $0x698] sm:$0xf]
        %v502 = vld [vmem:[#allocation5 + $0x69c] sm:$0xff]
        %v503 = vld [vmem:[#allocation5 + $0x6a4] sm:$0xff]
        %v504 = vld [vmem:[#allocation5 + $0x6ac] sm:$0xff]
        %v505 = vld [vmem:[#allocation5 + $0x6b4] sm:$0xff]
        %v506 = vld [vmem:[#allocation5 + $0x6bc] sm:$0xf]
        %v509 = vunpack.c.l.b16 %v265
        %v510 = vunpack.c.h.b16 %v265
        %v511 = vunpack.c.l.b16 %v266
        %v512 = vpack.c.b16 %v509, %v509
        %v513 = vpack.c.b16 %v510, %v510
        %v514 = vpack.c.b16 %v511, %v511
        %v758 = vunpack.c.l.b16 %v267
        %v759 = vunpack.c.h.b16 %v267
        %v760 = vunpack.c.l.b16 %v268
        %v761 = vunpack.c.h.b16 %v268
        %v762 = vunpack.c.l.b16 %v269
        %v763 = vunpack.c.h.b16 %v269
        %v764 = vunpack.c.l.b16 %v270
        %v765 = vunpack.c.h.b16 %v270
        %v766 = vunpack.c.l.b16 %v271
        %v767 = vunpack.c.l.b16 %v272
        %v768 = vunpack.c.h.b16 %v272
        %v769 = vunpack.c.l.b16 %v273
        %v770 = vunpack.c.h.b16 %v273
        %v771 = vunpack.c.l.b16 %v274
        %v772 = vunpack.c.h.b16 %v274
        %v773 = vunpack.c.l.b16 %v275
        %v774 = vunpack.c.h.b16 %v275
        %v775 = vunpack.c.l.b16 %v276
        %v776 = vunpack.c.l.b16 %v277
        %v777 = vunpack.c.h.b16 %v277
        %v778 = vunpack.c.l.b16 %v278
        %v779 = vunpack.c.h.b16 %v278
        %v780 = vunpack.c.l.b16 %v279
        %v781 = vunpack.c.h.b16 %v279
        %v782 = vunpack.c.l.b16 %v280
        %v783 = vunpack.c.h.b16 %v280
        %v784 = vunpack.c.l.b16 %v281
        %v785 = vunpack.c.l.b16 %v282
        %v786 = vunpack.c.h.b16 %v282
        %v787 = vunpack.c.l.b16 %v283
        %v788 = vunpack.c.h.b16 %v283
        %v789 = vunpack.c.l.b16 %v284
        %v790 = vunpack.c.h.b16 %v284
        %v791 = vunpack.c.l.b16 %v285
        %v792 = vunpack.c.h.b16 %v285
        %v793 = vunpack.c.l.b16 %v286
        %v794 = vunpack.c.l.b16 %v287
        %v795 = vunpack.c.h.b16 %v287
        %v796 = vunpack.c.l.b16 %v288
        %v797 = vunpack.c.h.b16 %v288
        %v798 = vunpack.c.l.b16 %v289
        %v799 = vunpack.c.h.b16 %v289
        %v800 = vunpack.c.l.b16 %v290
        %v801 = vunpack.c.h.b16 %v290
        %v802 = vunpack.c.l.b16 %v291
        %v803 = vunpack.c.l.b16 %v292
        %v804 = vunpack.c.h.b16 %v292
        %v805 = vunpack.c.l.b16 %v293
        %v806 = vunpack.c.h.b16 %v293
        %v807 = vunpack.c.l.b16 %v294
        %v808 = vunpack.c.h.b16 %v294
        %v809 = vunpack.c.l.b16 %v295
        %v810 = vunpack.c.h.b16 %v295
        %v811 = vunpack.c.l.b16 %v296
        %v812 = vunpack.c.l.b16 %v297
        %v813 = vunpack.c.h.b16 %v297
        %v814 = vunpack.c.l.b16 %v298
        %v815 = vunpack.c.h.b16 %v298
        %v816 = vunpack.c.l.b16 %v299
        %v817 = vunpack.c.h.b16 %v299
        %v818 = vunpack.c.l.b16 %v300
        %v819 = vunpack.c.h.b16 %v300
        %v820 = vunpack.c.l.b16 %v301
        %v821 = vunpack.c.l.b16 %v302
        %v822 = vunpack.c.h.b16 %v302
        %v823 = vunpack.c.l.b16 %v303
        %v824 = vunpack.c.h.b16 %v303
        %v825 = vunpack.c.l.b16 %v304
        %v826 = vunpack.c.h.b16 %v304
        %v827 = vunpack.c.l.b16 %v305
        %v828 = vunpack.c.h.b16 %v305
        %v829 = vunpack.c.l.b16 %v306
        %v830 = vunpack.c.l.b16 %v307
        %v831 = vunpack.c.h.b16 %v307
        %v832 = vunpack.c.l.b16 %v308
        %v833 = vunpack.c.h.b16 %v308
        %v834 = vunpack.c.l.b16 %v309
        %v835 = vunpack.c.h.b16 %v309
        %v836 = vunpack.c.l.b16 %v310
        %v837 = vunpack.c.h.b16 %v310
        %v838 = vunpack.c.l.b16 %v311
        %v839 = vunpack.c.l.b16 %v312
        %v840 = vunpack.c.h.b16 %v312
        %v841 = vunpack.c.l.b16 %v313
        %v842 = vunpack.c.h.b16 %v313
        %v843 = vunpack.c.l.b16 %v314
        %v844 = vunpack.c.h.b16 %v314
        %v845 = vunpack.c.l.b16 %v315
        %v846 = vunpack.c.h.b16 %v315
        %v847 = vunpack.c.l.b16 %v316
        %v848 = vunpack.c.l.b16 %v317
        %v849 = vunpack.c.h.b16 %v317
        %v850 = vunpack.c.l.b16 %v318
        %v851 = vunpack.c.h.b16 %v318
        %v852 = vunpack.c.l.b16 %v319
        %v853 = vunpack.c.h.b16 %v319
        %v854 = vunpack.c.l.b16 %v320
        %v855 = vunpack.c.h.b16 %v320
        %v856 = vunpack.c.l.b16 %v321
        %v857 = vunpack.c.l.b16 %v322
        %v858 = vunpack.c.h.b16 %v322
        %v859 = vunpack.c.l.b16 %v323
        %v860 = vunpack.c.h.b16 %v323
        %v861 = vunpack.c.l.b16 %v324
        %v862 = vunpack.c.h.b16 %v324
        %v863 = vunpack.c.l.b16 %v325
        %v864 = vunpack.c.h.b16 %v325
        %v865 = vunpack.c.l.b16 %v326
        %v866 = vunpack.c.l.b16 %v327
        %v867 = vunpack.c.h.b16 %v327
        %v868 = vunpack.c.l.b16 %v328
        %v869 = vunpack.c.h.b16 %v328
        %v870 = vunpack.c.l.b16 %v329
        %v871 = vunpack.c.h.b16 %v329
        %v872 = vunpack.c.l.b16 %v330
        %v873 = vunpack.c.h.b16 %v330
        %v874 = vunpack.c.l.b16 %v331
        %v875 = vunpack.c.l.b16 %v332
        %v876 = vunpack.c.h.b16 %v332
        %v877 = vunpack.c.l.b16 %v333
        %v878 = vunpack.c.h.b16 %v333
        %v879 = vunpack.c.l.b16 %v334
        %v880 = vunpack.c.h.b16 %v334
        %v881 = vunpack.c.l.b16 %v335
        %v882 = vunpack.c.h.b16 %v335
        %v883 = vunpack.c.l.b16 %v336
        %v884 = vunpack.c.l.b16 %v337
        %v885 = vunpack.c.h.b16 %v337
        %v886 = vunpack.c.l.b16 %v338
        %v887 = vunpack.c.h.b16 %v338
        %v888 = vunpack.c.l.b16 %v339
        %v889 = vunpack.c.h.b16 %v339
        %v890 = vunpack.c.l.b16 %v340
        %v891 = vunpack.c.h.b16 %v340
        %v892 = vunpack.c.l.b16 %v341
        %v893 = vunpack.c.l.b16 %v342
        %v894 = vunpack.c.h.b16 %v342
        %v895 = vunpack.c.l.b16 %v343
        %v896 = vunpack.c.h.b16 %v343
        %v897 = vunpack.c.l.b16 %v344
        %v898 = vunpack.c.h.b16 %v344
        %v899 = vunpack.c.l.b16 %v345
        %v900 = vunpack.c.h.b16 %v345
        %v901 = vunpack.c.l.b16 %v346
        %v902 = vunpack.c.l.b16 %v347
        %v903 = vunpack.c.h.b16 %v347
        %v904 = vunpack.c.l.b16 %v348
        %v905 = vunpack.c.h.b16 %v348
        %v906 = vunpack.c.l.b16 %v349
        %v907 = vunpack.c.h.b16 %v349
        %v908 = vunpack.c.l.b16 %v350
        %v909 = vunpack.c.h.b16 %v350
        %v910 = vunpack.c.l.b16 %v351
        %v911 = vunpack.c.l.b16 %v352
        %v912 = vunpack.c.h.b16 %v352
        %v913 = vunpack.c.l.b16 %v353
        %v914 = vunpack.c.h.b16 %v353
        %v915 = vunpack.c.l.b16 %v354
        %v916 = vunpack.c.h.b16 %v354
        %v917 = vunpack.c.l.b16 %v355
        %v918 = vunpack.c.h.b16 %v355
        %v919 = vunpack.c.l.b16 %v356
        %v920 = vunpack.c.l.b16 %v357
        %v921 = vunpack.c.h.b16 %v357
        %v922 = vunpack.c.l.b16 %v358
        %v923 = vunpack.c.h.b16 %v358
        %v924 = vunpack.c.l.b16 %v359
        %v925 = vunpack.c.h.b16 %v359
        %v926 = vunpack.c.l.b16 %v360
        %v927 = vunpack.c.h.b16 %v360
        %v928 = vunpack.c.l.b16 %v361
        %v929 = vunpack.c.l.b16 %v362
        %v930 = vunpack.c.h.b16 %v362
        %v931 = vunpack.c.l.b16 %v363
        %v932 = vunpack.c.h.b16 %v363
        %v933 = vunpack.c.l.b16 %v364
        %v934 = vunpack.c.h.b16 %v364
        %v935 = vunpack.c.l.b16 %v365
        %v936 = vunpack.c.h.b16 %v365
        %v937 = vunpack.c.l.b16 %v366
        %v938 = vunpack.c.l.b16 %v367
        %v939 = vunpack.c.h.b16 %v367
        %v940 = vunpack.c.l.b16 %v368
        %v941 = vunpack.c.h.b16 %v368
        %v942 = vunpack.c.l.b16 %v369
        %v943 = vunpack.c.h.b16 %v369
        %v944 = vunpack.c.l.b16 %v370
        %v945 = vunpack.c.h.b16 %v370
        %v946 = vunpack.c.l.b16 %v371
        %v947 = vunpack.c.l.b16 %v372
        %v948 = vunpack.c.h.b16 %v372
        %v949 = vunpack.c.l.b16 %v373
        %v950 = vunpack.c.h.b16 %v373
        %v951 = vunpack.c.l.b16 %v374
        %v952 = vunpack.c.h.b16 %v374
        %v953 = vunpack.c.l.b16 %v375
        %v954 = vunpack.c.h.b16 %v375
        %v955 = vunpack.c.l.b16 %v376
        %v956 = vunpack.c.l.b16 %v377
        %v957 = vunpack.c.h.b16 %v377
        %v958 = vunpack.c.l.b16 %v378
        %v959 = vunpack.c.h.b16 %v378
        %v960 = vunpack.c.l.b16 %v379
        %v961 = vunpack.c.h.b16 %v379
        %v962 = vunpack.c.l.b16 %v380
        %v963 = vunpack.c.h.b16 %v380
        %v964 = vunpack.c.l.b16 %v381
        %v965 = vunpack.c.l.b16 %v382
        %v966 = vunpack.c.h.b16 %v382
        %v967 = vunpack.c.l.b16 %v383
        %v968 = vunpack.c.h.b16 %v383
        %v969 = vunpack.c.l.b16 %v384
        %v970 = vunpack.c.h.b16 %v384
        %v971 = vunpack.c.l.b16 %v385
        %v972 = vunpack.c.h.b16 %v385
        %v973 = vunpack.c.l.b16 %v386
        %v974 = vunpack.c.l.b16 %v387
        %v975 = vunpack.c.h.b16 %v387
        %v976 = vunpack.c.l.b16 %v388
        %v977 = vunpack.c.h.b16 %v388
        %v978 = vunpack.c.l.b16 %v389
        %v979 = vunpack.c.h.b16 %v389
        %v980 = vunpack.c.l.b16 %v390
        %v981 = vunpack.c.h.b16 %v390
        %v982 = vunpack.c.l.b16 %v391
        %v983 = vunpack.c.l.b16 %v392
        %v984 = vunpack.c.h.b16 %v392
        %v985 = vunpack.c.l.b16 %v393
        %v986 = vunpack.c.h.b16 %v393
        %v987 = vunpack.c.l.b16 %v394
        %v988 = vunpack.c.h.b16 %v394
        %v989 = vunpack.c.l.b16 %v395
        %v990 = vunpack.c.h.b16 %v395
        %v991 = vunpack.c.l.b16 %v396
        %v992 = vunpack.c.l.b16 %v397
        %v993 = vunpack.c.h.b16 %v397
        %v994 = vunpack.c.l.b16 %v398
        %v995 = vunpack.c.h.b16 %v398
        %v996 = vunpack.c.l.b16 %v399
        %v997 = vunpack.c.h.b16 %v399
        %v998 = vunpack.c.l.b16 %v400
        %v999 = vunpack.c.h.b16 %v400
        %v1000 = vunpack.c.l.b16 %v401
        %v1001 = vunpack.c.l.b16 %v402
        %v1002 = vunpack.c.h.b16 %v402
        %v1003 = vunpack.c.l.b16 %v403
        %v1004 = vunpack.c.h.b16 %v403
        %v1005 = vunpack.c.l.b16 %v404
        %v1006 = vunpack.c.h.b16 %v404
        %v1007 = vunpack.c.l.b16 %v405
        %v1008 = vunpack.c.h.b16 %v405
        %v1009 = vunpack.c.l.b16 %v406
        %v1010 = vunpack.c.l.b16 %v407
        %v1011 = vunpack.c.h.b16 %v407
        %v1012 = vunpack.c.l.b16 %v408
        %v1013 = vunpack.c.h.b16 %v408
        %v1014 = vunpack.c.l.b16 %v409
        %v1015 = vunpack.c.h.b16 %v409
        %v1016 = vunpack.c.l.b16 %v410
        %v1017 = vunpack.c.h.b16 %v410
        %v1018 = vunpack.c.l.b16 %v411
        %v1019 = vunpack.c.l.b16 %v412
        %v1020 = vunpack.c.h.b16 %v412
        %v1021 = vunpack.c.l.b16 %v413
        %v1022 = vunpack.c.h.b16 %v413
        %v1023 = vunpack.c.l.b16 %v414
        %v1024 = vunpack.c.h.b16 %v414
        %v1025 = vunpack.c.l.b16 %v415
        %v1026 = vunpack.c.h.b16 %v415
        %v1027 = vunpack.c.l.b16 %v416
        %v1028 = vunpack.c.l.b16 %v417
        %v1029 = vunpack.c.h.b16 %v417
        %v1030 = vunpack.c.l.b16 %v418
        %v1031 = vunpack.c.h.b16 %v418
        %v1032 = vunpack.c.l.b16 %v419
        %v1033 = vunpack.c.h.b16 %v419
        %v1034 = vunpack.c.l.b16 %v420
        %v1035 = vunpack.c.h.b16 %v420
        %v1036 = vunpack.c.l.b16 %v421
        %v1037 = vunpack.c.l.b16 %v422
        %v1038 = vunpack.c.h.b16 %v422
        %v1039 = vunpack.c.l.b16 %v423
        %v1040 = vunpack.c.h.b16 %v423
        %v1041 = vunpack.c.l.b16 %v424
        %v1042 = vunpack.c.h.b16 %v424
        %v1043 = vunpack.c.l.b16 %v425
        %v1044 = vunpack.c.h.b16 %v425
        %v1045 = vunpack.c.l.b16 %v426
        %v1046 = vunpack.c.l.b16 %v427
        %v1047 = vunpack.c.h.b16 %v427
        %v1048 = vunpack.c.l.b16 %v428
        %v1049 = vunpack.c.h.b16 %v428
        %v1050 = vunpack.c.l.b16 %v429
        %v1051 = vunpack.c.h.b16 %v429
        %v1052 = vunpack.c.l.b16 %v430
        %v1053 = vunpack.c.h.b16 %v430
        %v1054 = vunpack.c.l.b16 %v431
        %v1055 = vunpack.c.l.b16 %v432
        %v1056 = vunpack.c.h.b16 %v432
        %v1057 = vunpack.c.l.b16 %v433
        %v1058 = vunpack.c.h.b16 %v433
        %v1059 = vunpack.c.l.b16 %v434
        %v1060 = vunpack.c.h.b16 %v434
        %v1061 = vunpack.c.l.b16 %v435
        %v1062 = vunpack.c.h.b16 %v435
        %v1063 = vunpack.c.l.b16 %v436
        %v1064 = vunpack.c.l.b16 %v437
        %v1065 = vunpack.c.h.b16 %v437
        %v1066 = vunpack.c.l.b16 %v438
        %v1067 = vunpack.c.h.b16 %v438
        %v1068 = vunpack.c.l.b16 %v439
        %v1069 = vunpack.c.h.b16 %v439
        %v1070 = vunpack.c.l.b16 %v440
        %v1071 = vunpack.c.h.b16 %v440
        %v1072 = vunpack.c.l.b16 %v441
        %v1073 = vunpack.c.l.b16 %v442
        %v1074 = vunpack.c.h.b16 %v442
        %v1075 = vunpack.c.l.b16 %v443
        %v1076 = vunpack.c.h.b16 %v443
        %v1077 = vunpack.c.l.b16 %v444
        %v1078 = vunpack.c.h.b16 %v444
        %v1079 = vunpack.c.l.b16 %v445
        %v1080 = vunpack.c.h.b16 %v445
        %v1081 = vunpack.c.l.b16 %v446
        %v1082 = vunpack.c.l.b16 %v447
        %v1083 = vunpack.c.h.b16 %v447
        %v1084 = vunpack.c.l.b16 %v448
        %v1085 = vunpack.c.h.b16 %v448
        %v1086 = vunpack.c.l.b16 %v449
        %v1087 = vunpack.c.h.b16 %v449
        %v1088 = vunpack.c.l.b16 %v450
        %v1089 = vunpack.c.h.b16 %v450
        %v1090 = vunpack.c.l.b16 %v451
        %v1091 = vunpack.c.l.b16 %v452
        %v1092 = vunpack.c.h.b16 %v452
        %v1093 = vunpack.c.l.b16 %v453
        %v1094 = vunpack.c.h.b16 %v453
        %v1095 = vunpack.c.l.b16 %v454
        %v1096 = vunpack.c.h.b16 %v454
        %v1097 = vunpack.c.l.b16 %v455
        %v1098 = vunpack.c.h.b16 %v455
        %v1099 = vunpack.c.l.b16 %v456
        %v1100 = vunpack.c.l.b16 %v457
        %v1101 = vunpack.c.h.b16 %v457
        %v1102 = vunpack.c.l.b16 %v458
        %v1103 = vunpack.c.h.b16 %v458
        %v1104 = vunpack.c.l.b16 %v459
        %v1105 = vunpack.c.h.b16 %v459
        %v1106 = vunpack.c.l.b16 %v460
        %v1107 = vunpack.c.h.b16 %v460
        %v1108 = vunpack.c.l.b16 %v461
        %v1109 = vunpack.c.l.b16 %v462
        %v1110 = vunpack.c.h.b16 %v462
        %v1111 = vunpack.c.l.b16 %v463
        %v1112 = vunpack.c.h.b16 %v463
        %v1113 = vunpack.c.l.b16 %v464
        %v1114 = vunpack.c.h.b16 %v464
        %v1115 = vunpack.c.l.b16 %v465
        %v1116 = vunpack.c.h.b16 %v465
        %v1117 = vunpack.c.l.b16 %v466
        %v1118 = vunpack.c.l.b16 %v467
        %v1119 = vunpack.c.h.b16 %v467
        %v1120 = vunpack.c.l.b16 %v468
        %v1121 = vunpack.c.h.b16 %v468
        %v1122 = vunpack.c.l.b16 %v469
        %v1123 = vunpack.c.h.b16 %v469
        %v1124 = vunpack.c.l.b16 %v470
        %v1125 = vunpack.c.h.b16 %v470
        %v1126 = vunpack.c.l.b16 %v471
        %v1127 = vunpack.c.l.b16 %v472
        %v1128 = vunpack.c.h.b16 %v472
        %v1129 = vunpack.c.l.b16 %v473
        %v1130 = vunpack.c.h.b16 %v473
        %v1131 = vunpack.c.l.b16 %v474
        %v1132 = vunpack.c.h.b16 %v474
        %v1133 = vunpack.c.l.b16 %v475
        %v1134 = vunpack.c.h.b16 %v475
        %v1135 = vunpack.c.l.b16 %v476
        %v1136 = vunpack.c.l.b16 %v477
        %v1137 = vunpack.c.h.b16 %v477
        %v1138 = vunpack.c.l.b16 %v478
        %v1139 = vunpack.c.h.b16 %v478
        %v1140 = vunpack.c.l.b16 %v479
        %v1141 = vunpack.c.h.b16 %v479
        %v1142 = vunpack.c.l.b16 %v480
        %v1143 = vunpack.c.h.b16 %v480
        %v1144 = vunpack.c.l.b16 %v481
        %v1145 = vunpack.c.l.b16 %v482
        %v1146 = vunpack.c.h.b16 %v482
        %v1147 = vunpack.c.l.b16 %v483
        %v1148 = vunpack.c.h.b16 %v483
        %v1149 = vunpack.c.l.b16 %v484
        %v1150 = vunpack.c.h.b16 %v484
        %v1151 = vunpack.c.l.b16 %v485
        %v1152 = vunpack.c.h.b16 %v485
        %v1153 = vunpack.c.l.b16 %v486
        %v1154 = vunpack.c.l.b16 %v487
        %v1155 = vunpack.c.h.b16 %v487
        %v1156 = vunpack.c.l.b16 %v488
        %v1157 = vunpack.c.h.b16 %v488
        %v1158 = vunpack.c.l.b16 %v489
        %v1159 = vunpack.c.h.b16 %v489
        %v1160 = vunpack.c.l.b16 %v490
        %v1161 = vunpack.c.h.b16 %v490
        %v1162 = vunpack.c.l.b16 %v491
        %v1163 = vunpack.c.l.b16 %v492
        %v1164 = vunpack.c.h.b16 %v492
        %v1165 = vunpack.c.l.b16 %v493
        %v1166 = vunpack.c.h.b16 %v493
        %v1167 = vunpack.c.l.b16 %v494
        %v1168 = vunpack.c.h.b16 %v494
        %v1169 = vunpack.c.l.b16 %v495
        %v1170 = vunpack.c.h.b16 %v495
        %v1171 = vunpack.c.l.b16 %v496
        %v1172 = vunpack.c.l.b16 %v497
        %v1173 = vunpack.c.h.b16 %v497
        %v1174 = vunpack.c.l.b16 %v498
        %v1175 = vunpack.c.h.b16 %v498
        %v1176 = vunpack.c.l.b16 %v499
        %v1177 = vunpack.c.h.b16 %v499
        %v1178 = vunpack.c.l.b16 %v500
        %v1179 = vunpack.c.h.b16 %v500
        %v1180 = vunpack.c.l.b16 %v501
        %v1181 = vunpack.c.l.b16 %v502
        %v1182 = vunpack.c.h.b16 %v502
        %v1183 = vunpack.c.l.b16 %v503
        %v1184 = vunpack.c.h.b16 %v503
        %v1185 = vunpack.c.l.b16 %v504
        %v1186 = vunpack.c.h.b16 %v504
        %v1187 = vunpack.c.l.b16 %v505
        %v1188 = vunpack.c.h.b16 %v505
        %v1189 = vunpack.c.l.b16 %v506
        %v1190 = vpack.c.b16 %v767, %v758
        %v1191 = vpack.c.b16 %v768, %v759
        %v1192 = vpack.c.b16 %v769, %v760
        %v1193 = vpack.c.b16 %v770, %v761
        %v1194 = vpack.c.b16 %v771, %v762
        %v1195 = vpack.c.b16 %v772, %v763
        %v1196 = vpack.c.b16 %v773, %v764
        %v1197 = vpack.c.b16 %v774, %v765
        %v1198 = vpack.c.b16 %v775, %v766
        %v1199 = vpack.c.b16 %v785, %v776
        %v1200 = vpack.c.b16 %v786, %v777
        %v1201 = vpack.c.b16 %v787, %v778
        %v1202 = vpack.c.b16 %v788, %v779
        %v1203 = vpack.c.b16 %v789, %v780
        %v1204 = vpack.c.b16 %v790, %v781
        %v1205 = vpack.c.b16 %v791, %v782
        %v1206 = vpack.c.b16 %v792, %v783
        %v1207 = vpack.c.b16 %v793, %v784
        %v1208 = vpack.c.b16 %v803, %v794
        %v1209 = vpack.c.b16 %v804, %v795
        %v1210 = vpack.c.b16 %v805, %v796
        %v1211 = vpack.c.b16 %v806, %v797
        %v1212 = vpack.c.b16 %v807, %v798
        %v1213 = vpack.c.b16 %v808, %v799
        %v1214 = vpack.c.b16 %v809, %v800
        %v1215 = vpack.c.b16 %v810, %v801
        %v1216 = vpack.c.b16 %v811, %v802
        %v1217 = vpack.c.b16 %v821, %v812
        %v1218 = vpack.c.b16 %v822, %v813
        %v1219 = vpack.c.b16 %v823, %v814
        %v1220 = vpack.c.b16 %v824, %v815
        %v1221 = vpack.c.b16 %v825, %v816
        %v1222 = vpack.c.b16 %v826, %v817
        %v1223 = vpack.c.b16 %v827, %v818
        %v1224 = vpack.c.b16 %v828, %v819
        %v1225 = vpack.c.b16 %v829, %v820
        %v1226 = vpack.c.b16 %v839, %v830
        %v1227 = vpack.c.b16 %v840, %v831
        %v1228 = vpack.c.b16 %v841, %v832
        %v1229 = vpack.c.b16 %v842, %v833
        %v1230 = vpack.c.b16 %v843, %v834
        %v1231 = vpack.c.b16 %v844, %v835
        %v1232 = vpack.c.b16 %v845, %v836
        %v1233 = vpack.c.b16 %v846, %v837
        %v1234 = vpack.c.b16 %v847, %v838
        %v1235 = vpack.c.b16 %v857, %v848
        %v1236 = vpack.c.b16 %v858, %v849
        %v1237 = vpack.c.b16 %v859, %v850
        %v1238 = vpack.c.b16 %v860, %v851
        %v1239 = vpack.c.b16 %v861, %v852
        %v1240 = vpack.c.b16 %v862, %v853
        %v1241 = vpack.c.b16 %v863, %v854
        %v1242 = vpack.c.b16 %v864, %v855
        %v1243 = vpack.c.b16 %v865, %v856
        %v1244 = vpack.c.b16 %v875, %v866
        %v1245 = vpack.c.b16 %v876, %v867
        %v1246 = vpack.c.b16 %v877, %v868
        %v1247 = vpack.c.b16 %v878, %v869
        %v1248 = vpack.c.b16 %v879, %v870
        %v1249 = vpack.c.b16 %v880, %v871
        %v1250 = vpack.c.b16 %v881, %v872
        %v1251 = vpack.c.b16 %v882, %v873
        %v1252 = vpack.c.b16 %v883, %v874
        %v1253 = vpack.c.b16 %v893, %v884
        %v1254 = vpack.c.b16 %v894, %v885
        %v1255 = vpack.c.b16 %v895, %v886
        %v1256 = vpack.c.b16 %v896, %v887
        %v1257 = vpack.c.b16 %v897, %v888
        %v1258 = vpack.c.b16 %v898, %v889
        %v1259 = vpack.c.b16 %v899, %v890
        %v1260 = vpack.c.b16 %v900, %v891
        %v1261 = vpack.c.b16 %v901, %v892
        %v1262 = vpack.c.b16 %v911, %v902
        %v1263 = vpack.c.b16 %v912, %v903
        %v1264 = vpack.c.b16 %v913, %v904
        %v1265 = vpack.c.b16 %v914, %v905
        %v1266 = vpack.c.b16 %v915, %v906
        %v1267 = vpack.c.b16 %v916, %v907
        %v1268 = vpack.c.b16 %v917, %v908
        %v1269 = vpack.c.b16 %v918, %v909
        %v1270 = vpack.c.b16 %v919, %v910
        %v1271 = vpack.c.b16 %v929, %v920
        %v1272 = vpack.c.b16 %v930, %v921
        %v1273 = vpack.c.b16 %v931, %v922
        %v1274 = vpack.c.b16 %v932, %v923
        %v1275 = vpack.c.b16 %v933, %v924
        %v1276 = vpack.c.b16 %v934, %v925
        %v1277 = vpack.c.b16 %v935, %v926
        %v1278 = vpack.c.b16 %v936, %v927
        %v1279 = vpack.c.b16 %v937, %v928
        %v1280 = vpack.c.b16 %v947, %v938
        %v1281 = vpack.c.b16 %v948, %v939
        %v1282 = vpack.c.b16 %v949, %v940
        %v1283 = vpack.c.b16 %v950, %v941
        %v1284 = vpack.c.b16 %v951, %v942
        %v1285 = vpack.c.b16 %v952, %v943
        %v1286 = vpack.c.b16 %v953, %v944
        %v1287 = vpack.c.b16 %v954, %v945
        %v1288 = vpack.c.b16 %v955, %v946
        %v1289 = vpack.c.b16 %v965, %v956
        %v1290 = vpack.c.b16 %v966, %v957
        %v1291 = vpack.c.b16 %v967, %v958
        %v1292 = vpack.c.b16 %v968, %v959
        %v1293 = vpack.c.b16 %v969, %v960
        %v1294 = vpack.c.b16 %v970, %v961
        %v1295 = vpack.c.b16 %v971, %v962
        %v1296 = vpack.c.b16 %v972, %v963
        %v1297 = vpack.c.b16 %v973, %v964
        %v1298 = vpack.c.b16 %v983, %v974
        %v1299 = vpack.c.b16 %v984, %v975
        %v1300 = vpack.c.b16 %v985, %v976
        %v1301 = vpack.c.b16 %v986, %v977
        %v1302 = vpack.c.b16 %v987, %v978
        %v1303 = vpack.c.b16 %v988, %v979
        %v1304 = vpack.c.b16 %v989, %v980
        %v1305 = vpack.c.b16 %v990, %v981
        %v1306 = vpack.c.b16 %v991, %v982
        %v1307 = vpack.c.b16 %v1001, %v992
        %v1308 = vpack.c.b16 %v1002, %v993
        %v1309 = vpack.c.b16 %v1003, %v994
        %v1310 = vpack.c.b16 %v1004, %v995
        %v1311 = vpack.c.b16 %v1005, %v996
        %v1312 = vpack.c.b16 %v1006, %v997
        %v1313 = vpack.c.b16 %v1007, %v998
        %v1314 = vpack.c.b16 %v1008, %v999
        %v1315 = vpack.c.b16 %v1009, %v1000
        %v1316 = vpack.c.b16 %v1019, %v1010
        %v1317 = vpack.c.b16 %v1020, %v1011
        %v1318 = vpack.c.b16 %v1021, %v1012
        %v1319 = vpack.c.b16 %v1022, %v1013
        %v1320 = vpack.c.b16 %v1023, %v1014
        %v1321 = vpack.c.b16 %v1024, %v1015
        %v1322 = vpack.c.b16 %v1025, %v1016
        %v1323 = vpack.c.b16 %v1026, %v1017
        %v1324 = vpack.c.b16 %v1027, %v1018
        %v1325 = vpack.c.b16 %v1037, %v1028
        %v1326 = vpack.c.b16 %v1038, %v1029
        %v1327 = vpack.c.b16 %v1039, %v1030
        %v1328 = vpack.c.b16 %v1040, %v1031
        %v1329 = vpack.c.b16 %v1041, %v1032
        %v1330 = vpack.c.b16 %v1042, %v1033
        %v1331 = vpack.c.b16 %v1043, %v1034
        %v1332 = vpack.c.b16 %v1044, %v1035
        %v1333 = vpack.c.b16 %v1045, %v1036
        %v1334 = vpack.c.b16 %v1055, %v1046
        %v1335 = vpack.c.b16 %v1056, %v1047
        %v1336 = vpack.c.b16 %v1057, %v1048
        %v1337 = vpack.c.b16 %v1058, %v1049
        %v1338 = vpack.c.b16 %v1059, %v1050
        %v1339 = vpack.c.b16 %v1060, %v1051
        %v1340 = vpack.c.b16 %v1061, %v1052
        %v1341 = vpack.c.b16 %v1062, %v1053
        %v1342 = vpack.c.b16 %v1063, %v1054
        %v1343 = vpack.c.b16 %v1073, %v1064
        %v1344 = vpack.c.b16 %v1074, %v1065
        %v1345 = vpack.c.b16 %v1075, %v1066
        %v1346 = vpack.c.b16 %v1076, %v1067
        %v1347 = vpack.c.b16 %v1077, %v1068
        %v1348 = vpack.c.b16 %v1078, %v1069
        %v1349 = vpack.c.b16 %v1079, %v1070
        %v1350 = vpack.c.b16 %v1080, %v1071
        %v1351 = vpack.c.b16 %v1081, %v1072
        %v1352 = vpack.c.b16 %v1091, %v1082
        %v1353 = vpack.c.b16 %v1092, %v1083
        %v1354 = vpack.c.b16 %v1093, %v1084
        %v1355 = vpack.c.b16 %v1094, %v1085
        %v1356 = vpack.c.b16 %v1095, %v1086
        %v1357 = vpack.c.b16 %v1096, %v1087
        %v1358 = vpack.c.b16 %v1097, %v1088
        %v1359 = vpack.c.b16 %v1098, %v1089
        %v1360 = vpack.c.b16 %v1099, %v1090
        %v1361 = vpack.c.b16 %v1109, %v1100
        %v1362 = vpack.c.b16 %v1110, %v1101
        %v1363 = vpack.c.b16 %v1111, %v1102
        %v1364 = vpack.c.b16 %v1112, %v1103
        %v1365 = vpack.c.b16 %v1113, %v1104
        %v1366 = vpack.c.b16 %v1114, %v1105
        %v1367 = vpack.c.b16 %v1115, %v1106
        %v1368 = vpack.c.b16 %v1116, %v1107
        %v1369 = vpack.c.b16 %v1117, %v1108
        %v1370 = vpack.c.b16 %v1127, %v1118
        %v1371 = vpack.c.b16 %v1128, %v1119
        %v1372 = vpack.c.b16 %v1129, %v1120
        %v1373 = vpack.c.b16 %v1130, %v1121
        %v1374 = vpack.c.b16 %v1131, %v1122
        %v1375 = vpack.c.b16 %v1132, %v1123
        %v1376 = vpack.c.b16 %v1133, %v1124
        %v1377 = vpack.c.b16 %v1134, %v1125
        %v1378 = vpack.c.b16 %v1135, %v1126
        %v1379 = vpack.c.b16 %v1145, %v1136
        %v1380 = vpack.c.b16 %v1146, %v1137
        %v1381 = vpack.c.b16 %v1147, %v1138
        %v1382 = vpack.c.b16 %v1148, %v1139
        %v1383 = vpack.c.b16 %v1149, %v1140
        %v1384 = vpack.c.b16 %v1150, %v1141
        %v1385 = vpack.c.b16 %v1151, %v1142
        %v1386 = vpack.c.b16 %v1152, %v1143
        %v1387 = vpack.c.b16 %v1153, %v1144
        %v1388 = vpack.c.b16 %v1163, %v1154
        %v1389 = vpack.c.b16 %v1164, %v1155
        %v1390 = vpack.c.b16 %v1165, %v1156
        %v1391 = vpack.c.b16 %v1166, %v1157
        %v1392 = vpack.c.b16 %v1167, %v1158
        %v1393 = vpack.c.b16 %v1168, %v1159
        %v1394 = vpack.c.b16 %v1169, %v1160
        %v1395 = vpack.c.b16 %v1170, %v1161
        %v1396 = vpack.c.b16 %v1171, %v1162
        %v1397 = vpack.c.b16 %v1181, %v1172
        %v1398 = vpack.c.b16 %v1182, %v1173
        %v1399 = vpack.c.b16 %v1183, %v1174
        %v1400 = vpack.c.b16 %v1184, %v1175
        %v1401 = vpack.c.b16 %v1185, %v1176
        %v1402 = vpack.c.b16 %v1186, %v1177
        %v1403 = vpack.c.b16 %v1187, %v1178
        %v1404 = vpack.c.b16 %v1188, %v1179
        %v1405 = vpack.c.b16 %v1189, %v1180
        %1622 = vmatpush.bf16.msra.mxu0 %v1253
        %1623 = vmatpush.bf16.msra.mxu0 %v1244
        %1624 = vmatpush.bf16.msra.mxu0 %v1235
        %1625 = vmatpush.bf16.msra.mxu0 %v1226
        %1626 = vmatpush.bf16.msra.mxu0 %v1217
        %1627 = vmatpush.bf16.msra.mxu0 %v1208
        %1628 = vmatpush.bf16.msra.mxu0 %v1199
        %1629 = vmatpush.bf16.msra.mxu0 %v1190
        %1630 = vmatmul.bf16.gmra.mxu0 %v512
        %v1631 = vpop.f32.mrf.mxu0
        %v1632 = vadd.f32 0.0, %v1631
        %v1633 = vpop.f32.mrf.mxu0
        %1634 = vdwg.mxu0
        %1635 = vmatpush.bf16.msra.mxu0 %v1325
        %1636 = vmatpush.bf16.msra.mxu0 %v1316
        %1637 = vmatpush.bf16.msra.mxu0 %v1307
        %1638 = vmatpush.bf16.msra.mxu0 %v1298
        %1639 = vmatpush.bf16.msra.mxu0 %v1289
        %1640 = vmatpush.bf16.msra.mxu0 %v1280
        %1641 = vmatpush.bf16.msra.mxu0 %v1271
        %1642 = vmatpush.bf16.msra.mxu0 %v1262
        %1643 = vmatmul.bf16.gmra.mxu0 %v513
        %v1644 = vpop.f32.mrf.mxu0
        %v1645 = vadd.f32 %v1632, %v1644
        %v1646 = vpop.f32.mrf.mxu0
        %1647 = vdwg.mxu0
        %1648 = vmatpush.bf16.msra.mxu0 %v1397
        %1649 = vmatpush.bf16.msra.mxu0 %v1388
        %1650 = vmatpush.bf16.msra.mxu0 %v1379
        %1651 = vmatpush.bf16.msra.mxu0 %v1370
        %1652 = vmatpush.bf16.msra.mxu0 %v1361
        %1653 = vmatpush.bf16.msra.mxu0 %v1352
        %1654 = vmatpush.bf16.msra.mxu0 %v1343
        %1655 = vmatpush.bf16.msra.mxu0 %v1334
        %1656 = vmatmul.bf16.gmra.mxu0 %v514
        %v1657 = vpop.f32.mrf.mxu0
        %v1658 = vadd.f32 %v1645, %v1657
        %v1659 = vpop.f32.mrf.mxu0
        %1660 = vdwg.mxu0
        %1661 = vmatpush.bf16.msra.mxu0 %v1254
        %1662 = vmatpush.bf16.msra.mxu0 %v1245
        %1663 = vmatpush.bf16.msra.mxu0 %v1236
        %1664 = vmatpush.bf16.msra.mxu0 %v1227
        %1665 = vmatpush.bf16.msra.mxu0 %v1218
        %1666 = vmatpush.bf16.msra.mxu0 %v1209
        %1667 = vmatpush.bf16.msra.mxu0 %v1200
        %1668 = vmatpush.bf16.msra.mxu0 %v1191
        %1669 = vmatmul.bf16.gmra.mxu0 %v512
        %v1670 = vpop.f32.mrf.mxu0
        %v1671 = vadd.f32 0.0, %v1670
        %v1672 = vpop.f32.mrf.mxu0
        %1673 = vdwg.mxu0
        %1674 = vmatpush.bf16.msra.mxu0 %v1326
        %1675 = vmatpush.bf16.msra.mxu0 %v1317
        %1676 = vmatpush.bf16.msra.mxu0 %v1308
        %1677 = vmatpush.bf16.msra.mxu0 %v1299
        %1678 = vmatpush.bf16.msra.mxu0 %v1290
        %1679 = vmatpush.bf16.msra.mxu0 %v1281
        %1680 = vmatpush.bf16.msra.mxu0 %v1272
        %1681 = vmatpush.bf16.msra.mxu0 %v1263
        %1682 = vmatmul.bf16.gmra.mxu0 %v513
        %v1683 = vpop.f32.mrf.mxu0
        %v1684 = vadd.f32 %v1671, %v1683
        %v1685 = vpop.f32.mrf.mxu0
        %1686 = vdwg.mxu0
        %1687 = vmatpush.bf16.msra.mxu0 %v1398
        %1688 = vmatpush.bf16.msra.mxu0 %v1389
        %1689 = vmatpush.bf16.msra.mxu0 %v1380
        %1690 = vmatpush.bf16.msra.mxu0 %v1371
        %1691 = vmatpush.bf16.msra.mxu0 %v1362
        %1692 = vmatpush.bf16.msra.mxu0 %v1353
        %1693 = vmatpush.bf16.msra.mxu0 %v1344
        %1694 = vmatpush.bf16.msra.mxu0 %v1335
        %1695 = vmatmul.bf16.gmra.mxu0 %v514
        %v1696 = vpop.f32.mrf.mxu0
        %v1697 = vadd.f32 %v1684, %v1696
        %v1698 = vpop.f32.mrf.mxu0
        %1699 = vdwg.mxu0
        %1700 = vmatpush.bf16.msra.mxu0 %v1255
        %1701 = vmatpush.bf16.msra.mxu0 %v1246
        %1702 = vmatpush.bf16.msra.mxu0 %v1237
        %1703 = vmatpush.bf16.msra.mxu0 %v1228
        %1704 = vmatpush.bf16.msra.mxu0 %v1219
        %1705 = vmatpush.bf16.msra.mxu0 %v1210
        %1706 = vmatpush.bf16.msra.mxu0 %v1201
        %1707 = vmatpush.bf16.msra.mxu0 %v1192
        %1708 = vmatmul.bf16.gmra.mxu0 %v512
        %v1709 = vpop.f32.mrf.mxu0
        %v1710 = vadd.f32 0.0, %v1709
        %v1711 = vpop.f32.mrf.mxu0
        %1712 = vdwg.mxu0
        %1713 = vmatpush.bf16.msra.mxu0 %v1327
        %1714 = vmatpush.bf16.msra.mxu0 %v1318
        %1715 = vmatpush.bf16.msra.mxu0 %v1309
        %1716 = vmatpush.bf16.msra.mxu0 %v1300
        %1717 = vmatpush.bf16.msra.mxu0 %v1291
        %1718 = vmatpush.bf16.msra.mxu0 %v1282
        %1719 = vmatpush.bf16.msra.mxu0 %v1273
        %1720 = vmatpush.bf16.msra.mxu0 %v1264
        %1721 = vmatmul.bf16.gmra.mxu0 %v513
        %v1722 = vpop.f32.mrf.mxu0
        %v1723 = vadd.f32 %v1710, %v1722
        %v1724 = vpop.f32.mrf.mxu0
        %1725 = vdwg.mxu0
        %1726 = vmatpush.bf16.msra.mxu0 %v1399
        %1727 = vmatpush.bf16.msra.mxu0 %v1390
        %1728 = vmatpush.bf16.msra.mxu0 %v1381
        %1729 = vmatpush.bf16.msra.mxu0 %v1372
        %1730 = vmatpush.bf16.msra.mxu0 %v1363
        %1731 = vmatpush.bf16.msra.mxu0 %v1354
        %1732 = vmatpush.bf16.msra.mxu0 %v1345
        %1733 = vmatpush.bf16.msra.mxu0 %v1336
        %1734 = vmatmul.bf16.gmra.mxu0 %v514
        %v1735 = vpop.f32.mrf.mxu0
        %v1736 = vadd.f32 %v1723, %v1735
        %v1737 = vpop.f32.mrf.mxu0
        %1738 = vdwg.mxu0
        %1739 = vmatpush.bf16.msra.mxu0 %v1256
        %1740 = vmatpush.bf16.msra.mxu0 %v1247
        %1741 = vmatpush.bf16.msra.mxu0 %v1238
        %1742 = vmatpush.bf16.msra.mxu0 %v1229
        %1743 = vmatpush.bf16.msra.mxu0 %v1220
        %1744 = vmatpush.bf16.msra.mxu0 %v1211
        %1745 = vmatpush.bf16.msra.mxu0 %v1202
        %1746 = vmatpush.bf16.msra.mxu0 %v1193
        %1747 = vmatmul.bf16.gmra.mxu0 %v512
        %v1748 = vpop.f32.mrf.mxu0
        %v1749 = vadd.f32 0.0, %v1748
        %v1750 = vpop.f32.mrf.mxu0
        %1751 = vdwg.mxu0
        %1752 = vmatpush.bf16.msra.mxu0 %v1328
        %1753 = vmatpush.bf16.msra.mxu0 %v1319
        %1754 = vmatpush.bf16.msra.mxu0 %v1310
        %1755 = vmatpush.bf16.msra.mxu0 %v1301
        %1756 = vmatpush.bf16.msra.mxu0 %v1292
        %1757 = vmatpush.bf16.msra.mxu0 %v1283
        %1758 = vmatpush.bf16.msra.mxu0 %v1274
        %1759 = vmatpush.bf16.msra.mxu0 %v1265
        %1760 = vmatmul.bf16.gmra.mxu0 %v513
        %v1761 = vpop.f32.mrf.mxu0
        %v1762 = vadd.f32 %v1749, %v1761
        %v1763 = vpop.f32.mrf.mxu0
        %1764 = vdwg.mxu0
        %1765 = vmatpush.bf16.msra.mxu0 %v1400
        %1766 = vmatpush.bf16.msra.mxu0 %v1391
        %1767 = vmatpush.bf16.msra.mxu0 %v1382
        %1768 = vmatpush.bf16.msra.mxu0 %v1373
        %1769 = vmatpush.bf16.msra.mxu0 %v1364
        %1770 = vmatpush.bf16.msra.mxu0 %v1355
        %1771 = vmatpush.bf16.msra.mxu0 %v1346
        %1772 = vmatpush.bf16.msra.mxu0 %v1337
        %1773 = vmatmul.bf16.gmra.mxu0 %v514
        %v1774 = vpop.f32.mrf.mxu0
        %v1775 = vadd.f32 %v1762, %v1774
        %v1776 = vpop.f32.mrf.mxu0
        %1777 = vdwg.mxu0
        %1778 = vmatpush.bf16.msra.mxu0 %v1257
        %1779 = vmatpush.bf16.msra.mxu0 %v1248
        %1780 = vmatpush.bf16.msra.mxu0 %v1239
        %1781 = vmatpush.bf16.msra.mxu0 %v1230
        %1782 = vmatpush.bf16.msra.mxu0 %v1221
        %1783 = vmatpush.bf16.msra.mxu0 %v1212
        %1784 = vmatpush.bf16.msra.mxu0 %v1203
        %1785 = vmatpush.bf16.msra.mxu0 %v1194
        %1786 = vmatmul.bf16.gmra.mxu0 %v512
        %v1787 = vpop.f32.mrf.mxu0
        %v1788 = vadd.f32 0.0, %v1787
        %v1789 = vpop.f32.mrf.mxu0
        %1790 = vdwg.mxu0
        %1791 = vmatpush.bf16.msra.mxu0 %v1329
        %1792 = vmatpush.bf16.msra.mxu0 %v1320
        %1793 = vmatpush.bf16.msra.mxu0 %v1311
        %1794 = vmatpush.bf16.msra.mxu0 %v1302
        %1795 = vmatpush.bf16.msra.mxu0 %v1293
        %1796 = vmatpush.bf16.msra.mxu0 %v1284
        %1797 = vmatpush.bf16.msra.mxu0 %v1275
        %1798 = vmatpush.bf16.msra.mxu0 %v1266
        %1799 = vmatmul.bf16.gmra.mxu0 %v513
        %v1800 = vpop.f32.mrf.mxu0
        %v1801 = vadd.f32 %v1788, %v1800
        %v1802 = vpop.f32.mrf.mxu0
        %1803 = vdwg.mxu0
        %1804 = vmatpush.bf16.msra.mxu0 %v1401
        %1805 = vmatpush.bf16.msra.mxu0 %v1392
        %1806 = vmatpush.bf16.msra.mxu0 %v1383
        %1807 = vmatpush.bf16.msra.mxu0 %v1374
        %1808 = vmatpush.bf16.msra.mxu0 %v1365
        %1809 = vmatpush.bf16.msra.mxu0 %v1356
        %1810 = vmatpush.bf16.msra.mxu0 %v1347
        %1811 = vmatpush.bf16.msra.mxu0 %v1338
        %1812 = vmatmul.bf16.gmra.mxu0 %v514
        %v1813 = vpop.f32.mrf.mxu0
        %v1814 = vadd.f32 %v1801, %v1813
        %v1815 = vpop.f32.mrf.mxu0
        %1816 = vdwg.mxu0
        %1817 = vmatpush.bf16.msra.mxu0 %v1258
        %1818 = vmatpush.bf16.msra.mxu0 %v1249
        %1819 = vmatpush.bf16.msra.mxu0 %v1240
        %1820 = vmatpush.bf16.msra.mxu0 %v1231
        %1821 = vmatpush.bf16.msra.mxu0 %v1222
        %1822 = vmatpush.bf16.msra.mxu0 %v1213
        %1823 = vmatpush.bf16.msra.mxu0 %v1204
        %1824 = vmatpush.bf16.msra.mxu0 %v1195
        %1825 = vmatmul.bf16.gmra.mxu0 %v512
        %v1826 = vpop.f32.mrf.mxu0
        %v1827 = vadd.f32 0.0, %v1826
        %v1828 = vpop.f32.mrf.mxu0
        %1829 = vdwg.mxu0
        %1830 = vmatpush.bf16.msra.mxu0 %v1330
        %1831 = vmatpush.bf16.msra.mxu0 %v1321
        %1832 = vmatpush.bf16.msra.mxu0 %v1312
        %1833 = vmatpush.bf16.msra.mxu0 %v1303
        %1834 = vmatpush.bf16.msra.mxu0 %v1294
        %1835 = vmatpush.bf16.msra.mxu0 %v1285
        %1836 = vmatpush.bf16.msra.mxu0 %v1276
        %1837 = vmatpush.bf16.msra.mxu0 %v1267
        %1838 = vmatmul.bf16.gmra.mxu0 %v513
        %v1839 = vpop.f32.mrf.mxu0
        %v1840 = vadd.f32 %v1827, %v1839
        %v1841 = vpop.f32.mrf.mxu0
        %1842 = vdwg.mxu0
        %1843 = vmatpush.bf16.msra.mxu0 %v1402
        %1844 = vmatpush.bf16.msra.mxu0 %v1393
        %1845 = vmatpush.bf16.msra.mxu0 %v1384
        %1846 = vmatpush.bf16.msra.mxu0 %v1375
        %1847 = vmatpush.bf16.msra.mxu0 %v1366
        %1848 = vmatpush.bf16.msra.mxu0 %v1357
        %1849 = vmatpush.bf16.msra.mxu0 %v1348
        %1850 = vmatpush.bf16.msra.mxu0 %v1339
        %1851 = vmatmul.bf16.gmra.mxu0 %v514
        %v1852 = vpop.f32.mrf.mxu0
        %v1853 = vadd.f32 %v1840, %v1852
        %v1854 = vpop.f32.mrf.mxu0
        %1855 = vdwg.mxu0
        %1856 = vmatpush.bf16.msra.mxu0 %v1259
        %1857 = vmatpush.bf16.msra.mxu0 %v1250
        %1858 = vmatpush.bf16.msra.mxu0 %v1241
        %1859 = vmatpush.bf16.msra.mxu0 %v1232
        %1860 = vmatpush.bf16.msra.mxu0 %v1223
        %1861 = vmatpush.bf16.msra.mxu0 %v1214
        %1862 = vmatpush.bf16.msra.mxu0 %v1205
        %1863 = vmatpush.bf16.msra.mxu0 %v1196
        %1864 = vmatmul.bf16.gmra.mxu0 %v512
        %v1865 = vpop.f32.mrf.mxu0
        %v1866 = vadd.f32 0.0, %v1865
        %v1867 = vpop.f32.mrf.mxu0
        %1868 = vdwg.mxu0
        %1869 = vmatpush.bf16.msra.mxu0 %v1331
        %1870 = vmatpush.bf16.msra.mxu0 %v1322
        %1871 = vmatpush.bf16.msra.mxu0 %v1313
        %1872 = vmatpush.bf16.msra.mxu0 %v1304
        %1873 = vmatpush.bf16.msra.mxu0 %v1295
        %1874 = vmatpush.bf16.msra.mxu0 %v1286
        %1875 = vmatpush.bf16.msra.mxu0 %v1277
        %1876 = vmatpush.bf16.msra.mxu0 %v1268
        %1877 = vmatmul.bf16.gmra.mxu0 %v513
        %v1878 = vpop.f32.mrf.mxu0
        %v1879 = vadd.f32 %v1866, %v1878
        %v1880 = vpop.f32.mrf.mxu0
        %1881 = vdwg.mxu0
        %1882 = vmatpush.bf16.msra.mxu0 %v1403
        %1883 = vmatpush.bf16.msra.mxu0 %v1394
        %1884 = vmatpush.bf16.msra.mxu0 %v1385
        %1885 = vmatpush.bf16.msra.mxu0 %v1376
        %1886 = vmatpush.bf16.msra.mxu0 %v1367
        %1887 = vmatpush.bf16.msra.mxu0 %v1358
        %1888 = vmatpush.bf16.msra.mxu0 %v1349
        %1889 = vmatpush.bf16.msra.mxu0 %v1340
        %1890 = vmatmul.bf16.gmra.mxu0 %v514
        %v1891 = vpop.f32.mrf.mxu0
        %v1892 = vadd.f32 %v1879, %v1891
        %v1893 = vpop.f32.mrf.mxu0
        %1894 = vdwg.mxu0
        %1895 = vmatpush.bf16.msra.mxu0 %v1260
        %1896 = vmatpush.bf16.msra.mxu0 %v1251
        %1897 = vmatpush.bf16.msra.mxu0 %v1242
        %1898 = vmatpush.bf16.msra.mxu0 %v1233
        %1899 = vmatpush.bf16.msra.mxu0 %v1224
        %1900 = vmatpush.bf16.msra.mxu0 %v1215
        %1901 = vmatpush.bf16.msra.mxu0 %v1206
        %1902 = vmatpush.bf16.msra.mxu0 %v1197
        %1903 = vmatmul.bf16.gmra.mxu0 %v512
        %v1904 = vpop.f32.mrf.mxu0
        %v1905 = vadd.f32 0.0, %v1904
        %v1906 = vpop.f32.mrf.mxu0
        %1907 = vdwg.mxu0
        %1908 = vmatpush.bf16.msra.mxu0 %v1332
        %1909 = vmatpush.bf16.msra.mxu0 %v1323
        %1910 = vmatpush.bf16.msra.mxu0 %v1314
        %1911 = vmatpush.bf16.msra.mxu0 %v1305
        %1912 = vmatpush.bf16.msra.mxu0 %v1296
        %1913 = vmatpush.bf16.msra.mxu0 %v1287
        %1914 = vmatpush.bf16.msra.mxu0 %v1278
        %1915 = vmatpush.bf16.msra.mxu0 %v1269
        %1916 = vmatmul.bf16.gmra.mxu0 %v513
        %v1917 = vpop.f32.mrf.mxu0
        %v1918 = vadd.f32 %v1905, %v1917
        %v1919 = vpop.f32.mrf.mxu0
        %1920 = vdwg.mxu0
        %1921 = vmatpush.bf16.msra.mxu0 %v1404
        %1922 = vmatpush.bf16.msra.mxu0 %v1395
        %1923 = vmatpush.bf16.msra.mxu0 %v1386
        %1924 = vmatpush.bf16.msra.mxu0 %v1377
        %1925 = vmatpush.bf16.msra.mxu0 %v1368
        %1926 = vmatpush.bf16.msra.mxu0 %v1359
        %1927 = vmatpush.bf16.msra.mxu0 %v1350
        %1928 = vmatpush.bf16.msra.mxu0 %v1341
        %1929 = vmatmul.bf16.gmra.mxu0 %v514
        %v1930 = vpop.f32.mrf.mxu0
        %v1931 = vadd.f32 %v1918, %v1930
        %v1932 = vpop.f32.mrf.mxu0
        %1933 = vdwg.mxu0
        %1934 = vmatpush.bf16.msra.mxu0 %v1261
        %1935 = vmatpush.bf16.msra.mxu0 %v1252
        %1936 = vmatpush.bf16.msra.mxu0 %v1243
        %1937 = vmatpush.bf16.msra.mxu0 %v1234
        %1938 = vmatpush.bf16.msra.mxu0 %v1225
        %1939 = vmatpush.bf16.msra.mxu0 %v1216
        %1940 = vmatpush.bf16.msra.mxu0 %v1207
        %1941 = vmatpush.bf16.msra.mxu0 %v1198
        %1942 = vmatmul.bf16.gmra.mxu0 %v512
        %v1943 = vpop.f32.mrf.mxu0
        %v1944 = vadd.f32 0.0, %v1943
        %v1945 = vpop.f32.mrf.mxu0
        %1946 = vdwg.mxu0
        %1947 = vmatpush.bf16.msra.mxu0 %v1333
        %1948 = vmatpush.bf16.msra.mxu0 %v1324
        %1949 = vmatpush.bf16.msra.mxu0 %v1315
        %1950 = vmatpush.bf16.msra.mxu0 %v1306
        %1951 = vmatpush.bf16.msra.mxu0 %v1297
        %1952 = vmatpush.bf16.msra.mxu0 %v1288
        %1953 = vmatpush.bf16.msra.mxu0 %v1279
        %1954 = vmatpush.bf16.msra.mxu0 %v1270
        %1955 = vmatmul.bf16.gmra.mxu0 %v513
        %v1956 = vpop.f32.mrf.mxu0
        %v1957 = vadd.f32 %v1944, %v1956
        %v1958 = vpop.f32.mrf.mxu0
        %1959 = vdwg.mxu0
        %1960 = vmatpush.bf16.msra.mxu0 %v1405
        %1961 = vmatpush.bf16.msra.mxu0 %v1396
        %1962 = vmatpush.bf16.msra.mxu0 %v1387
        %1963 = vmatpush.bf16.msra.mxu0 %v1378
        %1964 = vmatpush.bf16.msra.mxu0 %v1369
        %1965 = vmatpush.bf16.msra.mxu0 %v1360
        %1966 = vmatpush.bf16.msra.mxu0 %v1351
        %1967 = vmatpush.bf16.msra.mxu0 %v1342
        %1968 = vmatmul.bf16.gmra.mxu0 %v514
        %v1969 = vpop.f32.mrf.mxu0
        %v1970 = vadd.f32 %v1957, %v1969
        %v1971 = vpop.f32.mrf.mxu0
        %1972 = vdwg.mxu0
        %v1973 = vpack.c.bf16 %v1697, %v1658
        %v1974 = vpack.c.bf16 %v1736, %v1736
        %v1975 = vmul.f32 %v1775, 0.05103104
        %v1976 = vmul.f32 %v1814, 0.05103104
        %v1977 = vmul.f32 %v1853, 0.05103104
        %v1978 = vpack.c.bf16 %v1976, %v1975
        %v1979 = vpack.c.bf16 %v1977, %v1977
        %v1980 = vpack.c.bf16 %v1931, %v1892
        %v1981 = vpack.c.bf16 %v1970, %v1970
        %v1982 = vlaneseq
        %v1983 = vshrl.u32 %v1982, 7
        %v1984 = vlaneseq
        %v1985 = vand.u32 %v1984, 127
        %vm1986 = vcmp.le.s32.totalorder %v1985, %v1983
        %vm1987 = vcmask 523264
        %v1989 = vsel %vm1987, %v1978, 0
        %v1992 = vsel %vm1987, %v1973, 0
        %1994 = vmatpush.bf16.xpose.msra.mxu0 0
        %1995 = vmatpush.bf16.xpose.msra.mxu0 0
        %1996 = vmatpush.bf16.xpose.msra.mxu0 0
        %1997 = vmatpush.bf16.xpose.msra.mxu0 0
        %1998 = vmatpush.bf16.xpose.msra.mxu0 0
        %1999 = vmatpush.bf16.xpose.msra.mxu0 0
        %2000 = vmatpush.bf16.xpose.msra.mxu0 0
        %2001 = vmatpush.bf16.xpose.msra.mxu0 %v1992
        %2002 = vmatmul.bf16.gmra.mxu0 %v1989
        %v2003 = vpop.f32.mrf.mxu0
        %v2004 = vadd.f32 0.0, %v2003
        %v2005 = vpop.f32.mrf.mxu0
        %2006 = vdwg.mxu0
        %v2007 = vsel %vm1986, %v2004, -inf
        %vm2008 = vcmask 64512
        %v2009 = vsel %vm2008, %v2007, -inf
        %2010 = vmax.xlane.f32.xlu0 %v2009
        %v2011 = vpop.xlane.xlu0 %2010
        %v2012 = vsub.f32 %v2007, %v2011
        %v2013 = vmul.f32 %v2012, 1.442695
        %v2014 = vpow.pop %v2013
        %v2015 = vsel %vm2008, %v2014, 0.0
        %2016 = vadd.xlane.f32.xlu0 %v2015
        %v2017 = vpop.xlane.xlu0 %2016
        %v2018 = vrcp.pop %v2017
        %v2019 = vmul.f32 %v2014, %v2018
        %v2020 = vpack.c.bf16 %v2019, %v2019
        %v2022 = vsel %vm2008, %v2020, 0
        %vm2024 = vcmask 1043456
        %v2026 = vsel %vm2024, %v1980, 0
        %2028 = vmatpush.bf16.msra.mxu0 0
        %2029 = vmatpush.bf16.msra.mxu0 0
        %2030 = vmatpush.bf16.msra.mxu0 0
        %2031 = vmatpush.bf16.msra.mxu0 0
        %2032 = vmatpush.bf16.msra.mxu0 0
        %2033 = vmatpush.bf16.msra.mxu0 0
        %2034 = vmatpush.bf16.msra.mxu0 0
        %2035 = vmatpush.bf16.msra.mxu0 %v2026
        %2036 = vmatmul.bf16.gmra.mxu0 %v2022
        %v2037 = vpop.f32.mrf.mxu0
        %v2038 = vadd.f32 0.0, %v2037
        %v2039 = vpop.f32.mrf.mxu0
        %2040 = vdwg.mxu0
        %v2041 = vpack.c.bf16 %v2038, %v2038
        %v2043 = vunpack.c.l.b16 %v1978
        %v2044 = vpack.c.b16 %v2043, %v2043
        %2045 = vrot.lane.b32.xlu0 %v2044, 64
        %v2046 = vpop.permute.xlu0 %2045
        %v2048 = vunpack.c.l.b16 %v1973
        %v2049 = vpack.c.b16 %v2048, %v2048
        %2050 = vrot.lane.b32.xlu0 %v2049, 64
        %v2051 = vpop.permute.xlu0 %2050
        %v2053 = vsel %vm1987, %v2046, 0
        %v2056 = vsel %vm1987, %v2051, 0
        %2058 = vmatpush.bf16.xpose.msra.mxu0 0
        %2059 = vmatpush.bf16.xpose.msra.mxu0 0
        %2060 = vmatpush.bf16.xpose.msra.mxu0 0
        %2061 = vmatpush.bf16.xpose.msra.mxu0 0
        %2062 = vmatpush.bf16.xpose.msra.mxu0 0
        %2063 = vmatpush.bf16.xpose.msra.mxu0 0
        %2064 = vmatpush.bf16.xpose.msra.mxu0 0
        %2065 = vmatpush.bf16.xpose.msra.mxu0 %v2056
        %2066 = vmatmul.bf16.gmra.mxu0 %v2053
        %v2067 = vpop.f32.mrf.mxu0
        %v2068 = vadd.f32 0.0, %v2067
        %v2069 = vpop.f32.mrf.mxu0
        %2070 = vdwg.mxu0
        %v2071 = vsel %vm1986, %v2068, -inf
        %v2072 = vsel %vm2008, %v2071, -inf
        %2073 = vmax.xlane.f32.xlu0 %v2072
        %v2074 = vpop.xlane.xlu0 %2073
        %v2075 = vsub.f32 %v2071, %v2074
        %v2076 = vmul.f32 %v2075, 1.442695
        %v2077 = vpow.pop %v2076
        %v2078 = vsel %vm2008, %v2077, 0.0
        %2079 = vadd.xlane.f32.xlu0 %v2078
        %v2080 = vpop.xlane.xlu0 %2079
        %v2081 = vrcp.pop %v2080
        %v2082 = vmul.f32 %v2077, %v2081
        %v2083 = vpack.c.bf16 %v2082, %v2082
        %v2085 = vunpack.c.l.b16 %v1980
        %v2086 = vpack.c.b16 %v2085, %v2085
        %2087 = vrot.lane.b32.xlu0 %v2086, 64
        %v2088 = vpop.permute.xlu0 %2087
        %v2090 = vsel %vm2008, %v2083, 0
        %v2093 = vsel %vm2024, %v2088, 0
        %2095 = vmatpush.bf16.msra.mxu0 0
        %2096 = vmatpush.bf16.msra.mxu0 0
        %2097 = vmatpush.bf16.msra.mxu0 0
        %2098 = vmatpush.bf16.msra.mxu0 0
        %2099 = vmatpush.bf16.msra.mxu0 0
        %2100 = vmatpush.bf16.msra.mxu0 0
        %2101 = vmatpush.bf16.msra.mxu0 0
        %2102 = vmatpush.bf16.msra.mxu0 %v2093
        %2103 = vmatmul.bf16.gmra.mxu0 %v2090
        %v2104 = vpop.f32.mrf.mxu0
        %v2105 = vadd.f32 0.0, %v2104
        %v2106 = vpop.f32.mrf.mxu0
        %2107 = vdwg.mxu0
        %v2108 = vpack.c.bf16 %v2105, %v2105
        %v2109 = vrot.slane %v1978, 4
        %v2110 = vrot.slane %v1973, 4
        %v2112 = vsel %vm1987, %v2109, 0
        %v2115 = vsel %vm1987, %v2110, 0
        %2117 = vmatpush.bf16.xpose.msra.mxu0 0
        %2118 = vmatpush.bf16.xpose.msra.mxu0 0
        %2119 = vmatpush.bf16.xpose.msra.mxu0 0
        %2120 = vmatpush.bf16.xpose.msra.mxu0 0
        %2121 = vmatpush.bf16.xpose.msra.mxu0 0
        %2122 = vmatpush.bf16.xpose.msra.mxu0 0
        %2123 = vmatpush.bf16.xpose.msra.mxu0 0
        %2124 = vmatpush.bf16.xpose.msra.mxu0 %v2115
        %2125 = vmatmul.bf16.gmra.mxu0 %v2112
        %v2126 = vpop.f32.mrf.mxu0
        %v2127 = vadd.f32 0.0, %v2126
        %v2128 = vpop.f32.mrf.mxu0
        %2129 = vdwg.mxu0
        %v2130 = vsel %vm1986, %v2127, -inf
        %v2131 = vsel %vm2008, %v2130, -inf
        %2132 = vmax.xlane.f32.xlu0 %v2131
        %v2133 = vpop.xlane.xlu0 %2132
        %v2134 = vsub.f32 %v2130, %v2133
        %v2135 = vmul.f32 %v2134, 1.442695
        %v2136 = vpow.pop %v2135
        %v2137 = vsel %vm2008, %v2136, 0.0
        %2138 = vadd.xlane.f32.xlu0 %v2137
        %v2139 = vpop.xlane.xlu0 %2138
        %v2140 = vrcp.pop %v2139
        %v2141 = vmul.f32 %v2136, %v2140
        %v2142 = vpack.c.bf16 %v2141, %v2141
        %v2143 = vrot.slane %v1980, 4
        %v2145 = vsel %vm2008, %v2142, 0
        %v2148 = vsel %vm2024, %v2143, 0
        %2150 = vmatpush.bf16.msra.mxu0 0
        %2151 = vmatpush.bf16.msra.mxu0 0
        %2152 = vmatpush.bf16.msra.mxu0 0
        %2153 = vmatpush.bf16.msra.mxu0 0
        %2154 = vmatpush.bf16.msra.mxu0 0
        %2155 = vmatpush.bf16.msra.mxu0 0
        %2156 = vmatpush.bf16.msra.mxu0 0
        %2157 = vmatpush.bf16.msra.mxu0 %v2148
        %2158 = vmatmul.bf16.gmra.mxu0 %v2145
        %v2159 = vpop.f32.mrf.mxu0
        %v2160 = vadd.f32 0.0, %v2159
        %v2161 = vpop.f32.mrf.mxu0
        %2162 = vdwg.mxu0
        %v2163 = vpack.c.bf16 %v2160, %v2160
        %2164 = vrot.lane.b32.xlu0 %v1978, 64
        %v2165 = vpop.permute.xlu0 %2164
        %v2166 = vrot.slane %v2165, 4
        %2167 = vrot.lane.b32.xlu0 %v1973, 64
        %v2168 = vpop.permute.xlu0 %2167
        %v2169 = vrot.slane %v2168, 4
        %v2171 = vsel %vm1987, %v2166, 0
        %v2174 = vsel %vm1987, %v2169, 0
        %2176 = vmatpush.bf16.xpose.msra.mxu0 0
        %2177 = vmatpush.bf16.xpose.msra.mxu0 0
        %2178 = vmatpush.bf16.xpose.msra.mxu0 0
        %2179 = vmatpush.bf16.xpose.msra.mxu0 0
        %2180 = vmatpush.bf16.xpose.msra.mxu0 0
        %2181 = vmatpush.bf16.xpose.msra.mxu0 0
        %2182 = vmatpush.bf16.xpose.msra.mxu0 0
        %2183 = vmatpush.bf16.xpose.msra.mxu0 %v2174
        %2184 = vmatmul.bf16.gmra.mxu0 %v2171
        %v2185 = vpop.f32.mrf.mxu0
        %v2186 = vadd.f32 0.0, %v2185
        %v2187 = vpop.f32.mrf.mxu0
        %2188 = vdwg.mxu0
        %v2189 = vsel %vm1986, %v2186, -inf
        %v2190 = vsel %vm2008, %v2189, -inf
        %2191 = vmax.xlane.f32.xlu0 %v2190
        %v2192 = vpop.xlane.xlu0 %2191
        %v2193 = vsub.f32 %v2189, %v2192
        %v2194 = vmul.f32 %v2193, 1.442695
        %v2195 = vpow.pop %v2194
        %v2196 = vsel %vm2008, %v2195, 0.0
        %2197 = vadd.xlane.f32.xlu0 %v2196
        %v2198 = vpop.xlane.xlu0 %2197
        %v2199 = vrcp.pop %v2198
        %v2200 = vmul.f32 %v2195, %v2199
        %v2201 = vpack.c.bf16 %v2200, %v2200
        %2202 = vrot.lane.b32.xlu0 %v1980, 64
        %v2203 = vpop.permute.xlu0 %2202
        %v2204 = vrot.slane %v2203, 4
        %v2206 = vsel %vm2008, %v2201, 0
        %v2209 = vsel %vm2024, %v2204, 0
        %2211 = vmatpush.bf16.msra.mxu0 0
        %2212 = vmatpush.bf16.msra.mxu0 0
        %2213 = vmatpush.bf16.msra.mxu0 0
        %2214 = vmatpush.bf16.msra.mxu0 0
        %2215 = vmatpush.bf16.msra.mxu0 0
        %2216 = vmatpush.bf16.msra.mxu0 0
        %2217 = vmatpush.bf16.msra.mxu0 0
        %2218 = vmatpush.bf16.msra.mxu0 %v2209
        %2219 = vmatmul.bf16.gmra.mxu0 %v2206
        %v2220 = vpop.f32.mrf.mxu0
        %v2221 = vadd.f32 0.0, %v2220
        %v2222 = vpop.f32.mrf.mxu0
        %2223 = vdwg.mxu0
        %v2224 = vpack.c.bf16 %v2221, %v2221
        %v2226 = vsel %vm1987, %v1979, 0
        %v2229 = vsel %vm1987, %v1974, 0
        %2231 = vmatpush.bf16.xpose.msra.mxu0 0
        %2232 = vmatpush.bf16.xpose.msra.mxu0 0
        %2233 = vmatpush.bf16.xpose.msra.mxu0 0
        %2234 = vmatpush.bf16.xpose.msra.mxu0 0
        %2235 = vmatpush.bf16.xpose.msra.mxu0 0
        %2236 = vmatpush.bf16.xpose.msra.mxu0 0
        %2237 = vmatpush.bf16.xpose.msra.mxu0 0
        %2238 = vmatpush.bf16.xpose.msra.mxu0 %v2229
        %2239 = vmatmul.bf16.gmra.mxu0 %v2226
        %v2240 = vpop.f32.mrf.mxu0
        %v2241 = vadd.f32 0.0, %v2240
        %v2242 = vpop.f32.mrf.mxu0
        %2243 = vdwg.mxu0
        %v2244 = vsel %vm1986, %v2241, -inf
        %v2245 = vsel %vm2008, %v2244, -inf
        %2246 = vmax.xlane.f32.xlu0 %v2245
        %v2247 = vpop.xlane.xlu0 %2246
        %v2248 = vsub.f32 %v2244, %v2247
        %v2249 = vmul.f32 %v2248, 1.442695
        %v2250 = vpow.pop %v2249
        %v2251 = vsel %vm2008, %v2250, 0.0
        %2252 = vadd.xlane.f32.xlu0 %v2251
        %v2253 = vpop.xlane.xlu0 %2252
        %v2254 = vrcp.pop %v2253
        %v2255 = vmul.f32 %v2250, %v2254
        %v2256 = vpack.c.bf16 %v2255, %v2255
        %v2258 = vsel %vm2008, %v2256, 0
        %v2261 = vsel %vm2024, %v1981, 0
        %2263 = vmatpush.bf16.msra.mxu0 0
        %2264 = vmatpush.bf16.msra.mxu0 0
        %2265 = vmatpush.bf16.msra.mxu0 0
        %2266 = vmatpush.bf16.msra.mxu0 0
        %2267 = vmatpush.bf16.msra.mxu0 0
        %2268 = vmatpush.bf16.msra.mxu0 0
        %2269 = vmatpush.bf16.msra.mxu0 0
        %2270 = vmatpush.bf16.msra.mxu0 %v2261
        %2271 = vmatmul.bf16.gmra.mxu0 %v2258
        %v2272 = vpop.f32.mrf.mxu0
        %v2273 = vadd.f32 0.0, %v2272
        %v2274 = vpop.f32.mrf.mxu0
        %2275 = vdwg.mxu0
        %v2276 = vpack.c.bf16 %v2273, %v2273
        %v2278 = vunpack.c.l.b16 %v1979
        %v2279 = vpack.c.b16 %v2278, %v2278
        %2280 = vrot.lane.b32.xlu0 %v2279, 64
        %v2281 = vpop.permute.xlu0 %2280
        %v2283 = vunpack.c.l.b16 %v1974
        %v2284 = vpack.c.b16 %v2283, %v2283
        %2285 = vrot.lane.b32.xlu0 %v2284, 64
        %v2286 = vpop.permute.xlu0 %2285
        %v2288 = vsel %vm1987, %v2281, 0
        %v2291 = vsel %vm1987, %v2286, 0
        %2293 = vmatpush.bf16.xpose.msra.mxu0 0
        %2294 = vmatpush.bf16.xpose.msra.mxu0 0
        %2295 = vmatpush.bf16.xpose.msra.mxu0 0
        %2296 = vmatpush.bf16.xpose.msra.mxu0 0
        %2297 = vmatpush.bf16.xpose.msra.mxu0 0
        %2298 = vmatpush.bf16.xpose.msra.mxu0 0
        %2299 = vmatpush.bf16.xpose.msra.mxu0 0
        %2300 = vmatpush.bf16.xpose.msra.mxu0 %v2291
        %2301 = vmatmul.bf16.gmra.mxu0 %v2288
        %v2302 = vpop.f32.mrf.mxu0
        %v2303 = vadd.f32 0.0, %v2302
        %v2304 = vpop.f32.mrf.mxu0
        %2305 = vdwg.mxu0
        %v2306 = vsel %vm1986, %v2303, -inf
        %v2307 = vsel %vm2008, %v2306, -inf
        %2308 = vmax.xlane.f32.xlu0 %v2307
        %v2309 = vpop.xlane.xlu0 %2308
        %v2310 = vsub.f32 %v2306, %v2309
        %v2311 = vmul.f32 %v2310, 1.442695
        %v2312 = vpow.pop %v2311
        %v2313 = vsel %vm2008, %v2312, 0.0
        %2314 = vadd.xlane.f32.xlu0 %v2313
        %v2315 = vpop.xlane.xlu0 %2314
        %v2316 = vrcp.pop %v2315
        %v2317 = vmul.f32 %v2312, %v2316
        %v2318 = vpack.c.bf16 %v2317, %v2317
        %v2320 = vunpack.c.l.b16 %v1981
        %v2321 = vpack.c.b16 %v2320, %v2320
        %2322 = vrot.lane.b32.xlu0 %v2321, 64
        %v2323 = vpop.permute.xlu0 %2322
        %v2325 = vsel %vm2008, %v2318, 0
        %v2328 = vsel %vm2024, %v2323, 0
        %2330 = vmatpush.bf16.msra.mxu0 0
        %2331 = vmatpush.bf16.msra.mxu0 0
        %2332 = vmatpush.bf16.msra.mxu0 0
        %2333 = vmatpush.bf16.msra.mxu0 0
        %2334 = vmatpush.bf16.msra.mxu0 0
        %2335 = vmatpush.bf16.msra.mxu0 0
        %2336 = vmatpush.bf16.msra.mxu0 0
        %2337 = vmatpush.bf16.msra.mxu0 %v2328
        %2338 = vmatmul.bf16.gmra.mxu0 %v2325
        %v2339 = vpop.f32.mrf.mxu0
        %v2340 = vadd.f32 0.0, %v2339
        %v2341 = vpop.f32.mrf.mxu0
        %2342 = vdwg.mxu0
        %v2343 = vpack.c.bf16 %v2340, %v2340
        %v2345 = vunpack.c.l.b16 %v2108
        %v2346 = vpack.c.b16 %v2345, %v2345
        %2347 = vrot.lane.b32.xlu0 %v2346, 64
        %v2348 = vpop.permute.xlu0 %2347
        %v2350 = vunpack.c.l.b16 %v2224
        %v2351 = vpack.c.b16 %v2350, %v2350
        %2352 = vrot.lane.b32.xlu0 %v2351, 64
        %v2353 = vpop.permute.xlu0 %2352
        %v2355 = vunpack.c.l.b16 %v2343
        %v2356 = vpack.c.b16 %v2355, %v2355
        %2357 = vrot.lane.b32.xlu0 %v2356, 64
        %v2358 = vpop.permute.xlu0 %2357
        %v2361 = vsel %vm1987, %v2041, %v2348
        %v2365 = vsel %vm1987, %v2163, %v2353
        %v2369 = vsel %vm1987, %v2276, %v2358
        %v2371 = vld [vmem:[#allocation7] sm:$0xff]
        %v2372 = vld [vmem:[#allocation7 + $0x8] sm:$0xf]
        %v2373 = vld [vmem:[#allocation7 + $0xc] sm:$0xff]
        %v2374 = vld [vmem:[#allocation7 + $0x14] sm:$0xf]
        %v2375 = vld [vmem:[#allocation7 + $0x18] sm:$0xff]
        %v2376 = vld [vmem:[#allocation7 + $0x20] sm:$0xf]
        %v2377 = vld [vmem:[#allocation7 + $0x24] sm:$0xff]
        %v2378 = vld [vmem:[#allocation7 + $0x2c] sm:$0xf]
        %v2379 = vld [vmem:[#allocation7 + $0x30] sm:$0xff]
        %v2380 = vld [vmem:[#allocation7 + $0x38] sm:$0xf]
        %v2381 = vld [vmem:[#allocation7 + $0x3c] sm:$0xff]
        %v2382 = vld [vmem:[#allocation7 + $0x44] sm:$0xf]
        %v2383 = vld [vmem:[#allocation7 + $0x48] sm:$0xff]
        %v2384 = vld [vmem:[#allocation7 + $0x50] sm:$0xf]
        %v2385 = vld [vmem:[#allocation7 + $0x54] sm:$0xff]
        %v2386 = vld [vmem:[#allocation7 + $0x5c] sm:$0xf]
        %v2387 = vld [vmem:[#allocation7 + $0x60] sm:$0xff]
        %v2388 = vld [vmem:[#allocation7 + $0x68] sm:$0xf]
        %v2389 = vld [vmem:[#allocation7 + $0x6c] sm:$0xff]
        %v2390 = vld [vmem:[#allocation7 + $0x74] sm:$0xf]
        %v2391 = vld [vmem:[#allocation7 + $0x78] sm:$0xff]
        %v2392 = vld [vmem:[#allocation7 + $0x80] sm:$0xf]
        %v2393 = vld [vmem:[#allocation7 + $0x84] sm:$0xff]
        %v2394 = vld [vmem:[#allocation7 + $0x8c] sm:$0xf]
        %v2395 = vld [vmem:[#allocation7 + $0x90] sm:$0xff]
        %v2396 = vld [vmem:[#allocation7 + $0x98] sm:$0xf]
        %v2397 = vld [vmem:[#allocation7 + $0x9c] sm:$0xff]
        %v2398 = vld [vmem:[#allocation7 + $0xa4] sm:$0xf]
        %v2399 = vld [vmem:[#allocation7 + $0xa8] sm:$0xff]
        %v2400 = vld [vmem:[#allocation7 + $0xb0] sm:$0xf]
        %v2401 = vld [vmem:[#allocation7 + $0xb4] sm:$0xff]
        %v2402 = vld [vmem:[#allocation7 + $0xbc] sm:$0xf]
        %v2403 = vld [vmem:[#allocation7 + $0xc0] sm:$0xff]
        %v2404 = vld [vmem:[#allocation7 + $0xc8] sm:$0xf]
        %v2405 = vld [vmem:[#allocation7 + $0xcc] sm:$0xff]
        %v2406 = vld [vmem:[#allocation7 + $0xd4] sm:$0xf]
        %v2407 = vld [vmem:[#allocation7 + $0xd8] sm:$0xff]
        %v2408 = vld [vmem:[#allocation7 + $0xe0] sm:$0xf]
        %v2409 = vld [vmem:[#allocation7 + $0xe4] sm:$0xff]
        %v2410 = vld [vmem:[#allocation7 + $0xec] sm:$0xf]
        %v2411 = vld [vmem:[#allocation7 + $0xf0] sm:$0xff]
        %v2412 = vld [vmem:[#allocation7 + $0xf8] sm:$0xf]
        %v2413 = vld [vmem:[#allocation7 + $0xfc] sm:$0xff]
        %v2414 = vld [vmem:[#allocation7 + $0x104] sm:$0xf]
        %v2415 = vld [vmem:[#allocation7 + $0x108] sm:$0xff]
        %v2416 = vld [vmem:[#allocation7 + $0x110] sm:$0xf]
        %v2417 = vld [vmem:[#allocation7 + $0x114] sm:$0xff]
        %v2418 = vld [vmem:[#allocation7 + $0x11c] sm:$0xf]
        %v2419 = vld [vmem:[#allocation7 + $0x120] sm:$0xff]
        %v2420 = vld [vmem:[#allocation7 + $0x128] sm:$0xf]
        %v2421 = vld [vmem:[#allocation7 + $0x12c] sm:$0xff]
        %v2422 = vld [vmem:[#allocation7 + $0x134] sm:$0xf]
        %v2423 = vld [vmem:[#allocation7 + $0x138] sm:$0xff]
        %v2424 = vld [vmem:[#allocation7 + $0x140] sm:$0xf]
        %v2425 = vld [vmem:[#allocation7 + $0x144] sm:$0xff]
        %v2426 = vld [vmem:[#allocation7 + $0x14c] sm:$0xf]
        %v2427 = vld [vmem:[#allocation7 + $0x150] sm:$0xff]
        %v2428 = vld [vmem:[#allocation7 + $0x158] sm:$0xf]
        %v2429 = vld [vmem:[#allocation7 + $0x15c] sm:$0xff]
        %v2430 = vld [vmem:[#allocation7 + $0x164] sm:$0xf]
        %v2431 = vld [vmem:[#allocation7 + $0x168] sm:$0xff]
        %v2432 = vld [vmem:[#allocation7 + $0x170] sm:$0xf]
        %v2433 = vld [vmem:[#allocation7 + $0x174] sm:$0xff]
        %v2434 = vld [vmem:[#allocation7 + $0x17c] sm:$0xf]
        %v2435 = vld [vmem:[#allocation7 + $0x180] sm:$0xff]
        %v2436 = vld [vmem:[#allocation7 + $0x188] sm:$0xf]
        %v2437 = vld [vmem:[#allocation7 + $0x18c] sm:$0xff]
        %v2438 = vld [vmem:[#allocation7 + $0x194] sm:$0xf]
        %v2439 = vld [vmem:[#allocation7 + $0x198] sm:$0xff]
        %v2440 = vld [vmem:[#allocation7 + $0x1a0] sm:$0xf]
        %v2441 = vld [vmem:[#allocation7 + $0x1a4] sm:$0xff]
        %v2442 = vld [vmem:[#allocation7 + $0x1ac] sm:$0xf]
        %v2443 = vld [vmem:[#allocation7 + $0x1b0] sm:$0xff]
        %v2444 = vld [vmem:[#allocation7 + $0x1b8] sm:$0xf]
        %v2445 = vld [vmem:[#allocation7 + $0x1bc] sm:$0xff]
        %v2446 = vld [vmem:[#allocation7 + $0x1c4] sm:$0xf]
        %v2447 = vld [vmem:[#allocation7 + $0x1c8] sm:$0xff]
        %v2448 = vld [vmem:[#allocation7 + $0x1d0] sm:$0xf]
        %v2449 = vld [vmem:[#allocation7 + $0x1d4] sm:$0xff]
        %v2450 = vld [vmem:[#allocation7 + $0x1dc] sm:$0xf]
        %v2451 = vld [vmem:[#allocation7 + $0x1e0] sm:$0xff]
        %v2452 = vld [vmem:[#allocation7 + $0x1e8] sm:$0xf]
        %v2453 = vld [vmem:[#allocation7 + $0x1ec] sm:$0xff]
        %v2454 = vld [vmem:[#allocation7 + $0x1f4] sm:$0xf]
        %v2455 = vld [vmem:[#allocation7 + $0x1f8] sm:$0xff]
        %v2456 = vld [vmem:[#allocation7 + $0x200] sm:$0xf]
        %v2457 = vld [vmem:[#allocation7 + $0x204] sm:$0xff]
        %v2458 = vld [vmem:[#allocation7 + $0x20c] sm:$0xf]
        %v2459 = vld [vmem:[#allocation7 + $0x210] sm:$0xff]
        %v2460 = vld [vmem:[#allocation7 + $0x218] sm:$0xf]
        %v2461 = vld [vmem:[#allocation7 + $0x21c] sm:$0xff]
        %v2462 = vld [vmem:[#allocation7 + $0x224] sm:$0xf]
        %v2463 = vld [vmem:[#allocation7 + $0x228] sm:$0xff]
        %v2464 = vld [vmem:[#allocation7 + $0x230] sm:$0xf]
        %v2465 = vld [vmem:[#allocation7 + $0x234] sm:$0xff]
        %v2466 = vld [vmem:[#allocation7 + $0x23c] sm:$0xf]
        %v2467 = vld [vmem:[#allocation8] sm:$0x7]
        %v2469 = vperm.slane %v2467, 0
        %v2470 = vperm.slane %v2467, 1
        %v2471 = vperm.slane %v2467, 2
        %v2571 = vunpack.c.l.b16 %v2371
        %v2572 = vunpack.c.h.b16 %v2371
        %v2573 = vunpack.c.l.b16 %v2372
        %v2574 = vunpack.c.l.b16 %v2373
        %v2575 = vunpack.c.h.b16 %v2373
        %v2576 = vunpack.c.l.b16 %v2374
        %v2577 = vunpack.c.l.b16 %v2375
        %v2578 = vunpack.c.h.b16 %v2375
        %v2579 = vunpack.c.l.b16 %v2376
        %v2580 = vunpack.c.l.b16 %v2377
        %v2581 = vunpack.c.h.b16 %v2377
        %v2582 = vunpack.c.l.b16 %v2378
        %v2583 = vunpack.c.l.b16 %v2379
        %v2584 = vunpack.c.h.b16 %v2379
        %v2585 = vunpack.c.l.b16 %v2380
        %v2586 = vunpack.c.l.b16 %v2381
        %v2587 = vunpack.c.h.b16 %v2381
        %v2588 = vunpack.c.l.b16 %v2382
        %v2589 = vunpack.c.l.b16 %v2383
        %v2590 = vunpack.c.h.b16 %v2383
        %v2591 = vunpack.c.l.b16 %v2384
        %v2592 = vunpack.c.l.b16 %v2385
        %v2593 = vunpack.c.h.b16 %v2385
        %v2594 = vunpack.c.l.b16 %v2386
        %v2595 = vunpack.c.l.b16 %v2387
        %v2596 = vunpack.c.h.b16 %v2387
        %v2597 = vunpack.c.l.b16 %v2388
        %v2598 = vunpack.c.l.b16 %v2389
        %v2599 = vunpack.c.h.b16 %v2389
        %v2600 = vunpack.c.l.b16 %v2390
        %v2601 = vunpack.c.l.b16 %v2391
        %v2602 = vunpack.c.h.b16 %v2391
        %v2603 = vunpack.c.l.b16 %v2392
        %v2604 = vunpack.c.l.b16 %v2393
        %v2605 = vunpack.c.h.b16 %v2393
        %v2606 = vunpack.c.l.b16 %v2394
        %v2607 = vunpack.c.l.b16 %v2395
        %v2608 = vunpack.c.h.b16 %v2395
        %v2609 = vunpack.c.l.b16 %v2396
        %v2610 = vunpack.c.l.b16 %v2397
        %v2611 = vunpack.c.h.b16 %v2397
        %v2612 = vunpack.c.l.b16 %v2398
        %v2613 = vunpack.c.l.b16 %v2399
        %v2614 = vunpack.c.h.b16 %v2399
        %v2615 = vunpack.c.l.b16 %v2400
        %v2616 = vunpack.c.l.b16 %v2401
        %v2617 = vunpack.c.h.b16 %v2401
        %v2618 = vunpack.c.l.b16 %v2402
        %v2619 = vunpack.c.l.b16 %v2403
        %v2620 = vunpack.c.h.b16 %v2403
        %v2621 = vunpack.c.l.b16 %v2404
        %v2622 = vunpack.c.l.b16 %v2405
        %v2623 = vunpack.c.h.b16 %v2405
        %v2624 = vunpack.c.l.b16 %v2406
        %v2625 = vunpack.c.l.b16 %v2407
        %v2626 = vunpack.c.h.b16 %v2407
        %v2627 = vunpack.c.l.b16 %v2408
        %v2628 = vunpack.c.l.b16 %v2409
        %v2629 = vunpack.c.h.b16 %v2409
        %v2630 = vunpack.c.l.b16 %v2410
        %v2631 = vunpack.c.l.b16 %v2411
        %v2632 = vunpack.c.h.b16 %v2411
        %v2633 = vunpack.c.l.b16 %v2412
        %v2634 = vunpack.c.l.b16 %v2413
        %v2635 = vunpack.c.h.b16 %v2413
        %v2636 = vunpack.c.l.b16 %v2414
        %v2637 = vunpack.c.l.b16 %v2415
        %v2638 = vunpack.c.h.b16 %v2415
        %v2639 = vunpack.c.l.b16 %v2416
        %v2640 = vunpack.c.l.b16 %v2417
        %v2641 = vunpack.c.h.b16 %v2417
        %v2642 = vunpack.c.l.b16 %v2418
        %v2643 = vunpack.c.l.b16 %v2419
        %v2644 = vunpack.c.h.b16 %v2419
        %v2645 = vunpack.c.l.b16 %v2420
        %v2646 = vunpack.c.l.b16 %v2421
        %v2647 = vunpack.c.h.b16 %v2421
        %v2648 = vunpack.c.l.b16 %v2422
        %v2649 = vunpack.c.l.b16 %v2423
        %v2650 = vunpack.c.h.b16 %v2423
        %v2651 = vunpack.c.l.b16 %v2424
        %v2652 = vunpack.c.l.b16 %v2425
        %v2653 = vunpack.c.h.b16 %v2425
        %v2654 = vunpack.c.l.b16 %v2426
        %v2655 = vunpack.c.l.b16 %v2427
        %v2656 = vunpack.c.h.b16 %v2427
        %v2657 = vunpack.c.l.b16 %v2428
        %v2658 = vunpack.c.l.b16 %v2429
        %v2659 = vunpack.c.h.b16 %v2429
        %v2660 = vunpack.c.l.b16 %v2430
        %v2661 = vunpack.c.l.b16 %v2431
        %v2662 = vunpack.c.h.b16 %v2431
        %v2663 = vunpack.c.l.b16 %v2432
        %v2664 = vunpack.c.l.b16 %v2433
        %v2665 = vunpack.c.h.b16 %v2433
        %v2666 = vunpack.c.l.b16 %v2434
        %v2667 = vunpack.c.l.b16 %v2435
        %v2668 = vunpack.c.h.b16 %v2435
        %v2669 = vunpack.c.l.b16 %v2436
        %v2670 = vunpack.c.l.b16 %v2437
        %v2671 = vunpack.c.h.b16 %v2437
        %v2672 = vunpack.c.l.b16 %v2438
        %v2673 = vunpack.c.l.b16 %v2439
        %v2674 = vunpack.c.h.b16 %v2439
        %v2675 = vunpack.c.l.b16 %v2440
        %v2676 = vunpack.c.l.b16 %v2441
        %v2677 = vunpack.c.h.b16 %v2441
        %v2678 = vunpack.c.l.b16 %v2442
        %v2679 = vunpack.c.l.b16 %v2443
        %v2680 = vunpack.c.h.b16 %v2443
        %v2681 = vunpack.c.l.b16 %v2444
        %v2682 = vunpack.c.l.b16 %v2445
        %v2683 = vunpack.c.h.b16 %v2445
        %v2684 = vunpack.c.l.b16 %v2446
        %v2685 = vunpack.c.l.b16 %v2447
        %v2686 = vunpack.c.h.b16 %v2447
        %v2687 = vunpack.c.l.b16 %v2448
        %v2688 = vunpack.c.l.b16 %v2449
        %v2689 = vunpack.c.h.b16 %v2449
        %v2690 = vunpack.c.l.b16 %v2450
        %v2691 = vunpack.c.l.b16 %v2451
        %v2692 = vunpack.c.h.b16 %v2451
        %v2693 = vunpack.c.l.b16 %v2452
        %v2694 = vunpack.c.l.b16 %v2453
        %v2695 = vunpack.c.h.b16 %v2453
        %v2696 = vunpack.c.l.b16 %v2454
        %v2697 = vunpack.c.l.b16 %v2455
        %v2698 = vunpack.c.h.b16 %v2455
        %v2699 = vunpack.c.l.b16 %v2456
        %v2700 = vunpack.c.l.b16 %v2457
        %v2701 = vunpack.c.h.b16 %v2457
        %v2702 = vunpack.c.l.b16 %v2458
        %v2703 = vunpack.c.l.b16 %v2459
        %v2704 = vunpack.c.h.b16 %v2459
        %v2705 = vunpack.c.l.b16 %v2460
        %v2706 = vunpack.c.l.b16 %v2461
        %v2707 = vunpack.c.h.b16 %v2461
        %v2708 = vunpack.c.l.b16 %v2462
        %v2709 = vunpack.c.l.b16 %v2463
        %v2710 = vunpack.c.h.b16 %v2463
        %v2711 = vunpack.c.l.b16 %v2464
        %v2712 = vunpack.c.l.b16 %v2465
        %v2713 = vunpack.c.h.b16 %v2465
        %v2714 = vunpack.c.l.b16 %v2466
        %v2715 = vpack.c.b16 %v2574, %v2571
        %v2716 = vpack.c.b16 %v2575, %v2572
        %v2717 = vpack.c.b16 %v2576, %v2573
        %v2718 = vpack.c.b16 %v2580, %v2577
        %v2719 = vpack.c.b16 %v2581, %v2578
        %v2720 = vpack.c.b16 %v2582, %v2579
        %v2721 = vpack.c.b16 %v2586, %v2583
        %v2722 = vpack.c.b16 %v2587, %v2584
        %v2723 = vpack.c.b16 %v2588, %v2585
        %v2724 = vpack.c.b16 %v2592, %v2589
        %v2725 = vpack.c.b16 %v2593, %v2590
        %v2726 = vpack.c.b16 %v2594, %v2591
        %v2727 = vpack.c.b16 %v2598, %v2595
        %v2728 = vpack.c.b16 %v2599, %v2596
        %v2729 = vpack.c.b16 %v2600, %v2597
        %v2730 = vpack.c.b16 %v2604, %v2601
        %v2731 = vpack.c.b16 %v2605, %v2602
        %v2732 = vpack.c.b16 %v2606, %v2603
        %v2733 = vpack.c.b16 %v2610, %v2607
        %v2734 = vpack.c.b16 %v2611, %v2608
        %v2735 = vpack.c.b16 %v2612, %v2609
        %v2736 = vpack.c.b16 %v2616, %v2613
        %v2737 = vpack.c.b16 %v2617, %v2614
        %v2738 = vpack.c.b16 %v2618, %v2615
        %v2739 = vpack.c.b16 %v2622, %v2619
        %v2740 = vpack.c.b16 %v2623, %v2620
        %v2741 = vpack.c.b16 %v2624, %v2621
        %v2742 = vpack.c.b16 %v2628, %v2625
        %v2743 = vpack.c.b16 %v2629, %v2626
        %v2744 = vpack.c.b16 %v2630, %v2627
        %v2745 = vpack.c.b16 %v2634, %v2631
        %v2746 = vpack.c.b16 %v2635, %v2632
        %v2747 = vpack.c.b16 %v2636, %v2633
        %v2748 = vpack.c.b16 %v2640, %v2637
        %v2749 = vpack.c.b16 %v2641, %v2638
        %v2750 = vpack.c.b16 %v2642, %v2639
        %v2751 = vpack.c.b16 %v2646, %v2643
        %v2752 = vpack.c.b16 %v2647, %v2644
        %v2753 = vpack.c.b16 %v2648, %v2645
        %v2754 = vpack.c.b16 %v2652, %v2649
        %v2755 = vpack.c.b16 %v2653, %v2650
        %v2756 = vpack.c.b16 %v2654, %v2651
        %v2757 = vpack.c.b16 %v2658, %v2655
        %v2758 = vpack.c.b16 %v2659, %v2656
        %v2759 = vpack.c.b16 %v2660, %v2657
        %v2760 = vpack.c.b16 %v2664, %v2661
        %v2761 = vpack.c.b16 %v2665, %v2662
        %v2762 = vpack.c.b16 %v2666, %v2663
        %v2763 = vpack.c.b16 %v2670, %v2667
        %v2764 = vpack.c.b16 %v2671, %v2668
        %v2765 = vpack.c.b16 %v2672, %v2669
        %v2766 = vpack.c.b16 %v2676, %v2673
        %v2767 = vpack.c.b16 %v2677, %v2674
        %v2768 = vpack.c.b16 %v2678, %v2675
        %v2769 = vpack.c.b16 %v2682, %v2679
        %v2770 = vpack.c.b16 %v2683, %v2680
        %v2771 = vpack.c.b16 %v2684, %v2681
        %v2772 = vpack.c.b16 %v2688, %v2685
        %v2773 = vpack.c.b16 %v2689, %v2686
        %v2774 = vpack.c.b16 %v2690, %v2687
        %v2775 = vpack.c.b16 %v2694, %v2691
        %v2776 = vpack.c.b16 %v2695, %v2692
        %v2777 = vpack.c.b16 %v2696, %v2693
        %v2778 = vpack.c.b16 %v2700, %v2697
        %v2779 = vpack.c.b16 %v2701, %v2698
        %v2780 = vpack.c.b16 %v2702, %v2699
        %v2781 = vpack.c.b16 %v2706, %v2703
        %v2782 = vpack.c.b16 %v2707, %v2704
        %v2783 = vpack.c.b16 %v2708, %v2705
        %v2784 = vpack.c.b16 %v2712, %v2709
        %v2785 = vpack.c.b16 %v2713, %v2710
        %v2786 = vpack.c.b16 %v2714, %v2711
        %2859 = vmatpush.bf16.msra.mxu0 %v2736
        %2860 = vmatpush.bf16.msra.mxu0 %v2733
        %2861 = vmatpush.bf16.msra.mxu0 %v2730
        %2862 = vmatpush.bf16.msra.mxu0 %v2727
        %2863 = vmatpush.bf16.msra.mxu0 %v2724
        %2864 = vmatpush.bf16.msra.mxu0 %v2721
        %2865 = vmatpush.bf16.msra.mxu0 %v2718
        %2866 = vmatpush.bf16.msra.mxu0 %v2715
        %2867 = vmatmul.bf16.gmra.mxu0 %v2361
        %v2868 = vpop.f32.mrf.mxu0
        %v2869 = vadd.f32 %v2469, %v2868
        %v2870 = vpop.f32.mrf.mxu0
        %2871 = vdwg.mxu0
        %2872 = vmatpush.bf16.msra.mxu0 %v2760
        %2873 = vmatpush.bf16.msra.mxu0 %v2757
        %2874 = vmatpush.bf16.msra.mxu0 %v2754
        %2875 = vmatpush.bf16.msra.mxu0 %v2751
        %2876 = vmatpush.bf16.msra.mxu0 %v2748
        %2877 = vmatpush.bf16.msra.mxu0 %v2745
        %2878 = vmatpush.bf16.msra.mxu0 %v2742
        %2879 = vmatpush.bf16.msra.mxu0 %v2739
        %2880 = vmatmul.bf16.gmra.mxu0 %v2365
        %v2881 = vpop.f32.mrf.mxu0
        %v2882 = vadd.f32 %v2869, %v2881
        %v2883 = vpop.f32.mrf.mxu0
        %2884 = vdwg.mxu0
        %2885 = vmatpush.bf16.msra.mxu0 %v2784
        %2886 = vmatpush.bf16.msra.mxu0 %v2781
        %2887 = vmatpush.bf16.msra.mxu0 %v2778
        %2888 = vmatpush.bf16.msra.mxu0 %v2775
        %2889 = vmatpush.bf16.msra.mxu0 %v2772
        %2890 = vmatpush.bf16.msra.mxu0 %v2769
        %2891 = vmatpush.bf16.msra.mxu0 %v2766
        %2892 = vmatpush.bf16.msra.mxu0 %v2763
        %2893 = vmatmul.bf16.gmra.mxu0 %v2369
        %v2894 = vpop.f32.mrf.mxu0
        %v2895 = vadd.f32 %v2882, %v2894
        %v2896 = vpop.f32.mrf.mxu0
        %2897 = vdwg.mxu0
        %2898 = vmatpush.bf16.msra.mxu0 %v2737
        %2899 = vmatpush.bf16.msra.mxu0 %v2734
        %2900 = vmatpush.bf16.msra.mxu0 %v2731
        %2901 = vmatpush.bf16.msra.mxu0 %v2728
        %2902 = vmatpush.bf16.msra.mxu0 %v2725
        %2903 = vmatpush.bf16.msra.mxu0 %v2722
        %2904 = vmatpush.bf16.msra.mxu0 %v2719
        %2905 = vmatpush.bf16.msra.mxu0 %v2716
        %2906 = vmatmul.bf16.gmra.mxu0 %v2361
        %v2907 = vpop.f32.mrf.mxu0
        %v2908 = vadd.f32 %v2470, %v2907
        %v2909 = vpop.f32.mrf.mxu0
        %2910 = vdwg.mxu0
        %2911 = vmatpush.bf16.msra.mxu0 %v2761
        %2912 = vmatpush.bf16.msra.mxu0 %v2758
        %2913 = vmatpush.bf16.msra.mxu0 %v2755
        %2914 = vmatpush.bf16.msra.mxu0 %v2752
        %2915 = vmatpush.bf16.msra.mxu0 %v2749
        %2916 = vmatpush.bf16.msra.mxu0 %v2746
        %2917 = vmatpush.bf16.msra.mxu0 %v2743
        %2918 = vmatpush.bf16.msra.mxu0 %v2740
        %2919 = vmatmul.bf16.gmra.mxu0 %v2365
        %v2920 = vpop.f32.mrf.mxu0
        %v2921 = vadd.f32 %v2908, %v2920
        %v2922 = vpop.f32.mrf.mxu0
        %2923 = vdwg.mxu0
        %2924 = vmatpush.bf16.msra.mxu0 %v2785
        %2925 = vmatpush.bf16.msra.mxu0 %v2782
        %2926 = vmatpush.bf16.msra.mxu0 %v2779
        %2927 = vmatpush.bf16.msra.mxu0 %v2776
        %2928 = vmatpush.bf16.msra.mxu0 %v2773
        %2929 = vmatpush.bf16.msra.mxu0 %v2770
        %2930 = vmatpush.bf16.msra.mxu0 %v2767
        %2931 = vmatpush.bf16.msra.mxu0 %v2764
        %2932 = vmatmul.bf16.gmra.mxu0 %v2369
        %v2933 = vpop.f32.mrf.mxu0
        %v2934 = vadd.f32 %v2921, %v2933
        %v2935 = vpop.f32.mrf.mxu0
        %2936 = vdwg.mxu0
        %2937 = vmatpush.bf16.msra.mxu0 %v2738
        %2938 = vmatpush.bf16.msra.mxu0 %v2735
        %2939 = vmatpush.bf16.msra.mxu0 %v2732
        %2940 = vmatpush.bf16.msra.mxu0 %v2729
        %2941 = vmatpush.bf16.msra.mxu0 %v2726
        %2942 = vmatpush.bf16.msra.mxu0 %v2723
        %2943 = vmatpush.bf16.msra.mxu0 %v2720
        %2944 = vmatpush.bf16.msra.mxu0 %v2717
        %2945 = vmatmul.bf16.gmra.mxu0 %v2361
        %v2946 = vpop.f32.mrf.mxu0
        %v2947 = vadd.f32 %v2471, %v2946
        %v2948 = vpop.f32.mrf.mxu0
        %2949 = vdwg.mxu0
        %2950 = vmatpush.bf16.msra.mxu0 %v2762
        %2951 = vmatpush.bf16.msra.mxu0 %v2759
        %2952 = vmatpush.bf16.msra.mxu0 %v2756
        %2953 = vmatpush.bf16.msra.mxu0 %v2753
        %2954 = vmatpush.bf16.msra.mxu0 %v2750
        %2955 = vmatpush.bf16.msra.mxu0 %v2747
        %2956 = vmatpush.bf16.msra.mxu0 %v2744
        %2957 = vmatpush.bf16.msra.mxu0 %v2741
        %2958 = vmatmul.bf16.gmra.mxu0 %v2365
        %v2959 = vpop.f32.mrf.mxu0
        %v2960 = vadd.f32 %v2947, %v2959
        %v2961 = vpop.f32.mrf.mxu0
        %2962 = vdwg.mxu0
        %2963 = vmatpush.bf16.msra.mxu0 %v2786
        %2964 = vmatpush.bf16.msra.mxu0 %v2783
        %2965 = vmatpush.bf16.msra.mxu0 %v2780
        %2966 = vmatpush.bf16.msra.mxu0 %v2777
        %2967 = vmatpush.bf16.msra.mxu0 %v2774
        %2968 = vmatpush.bf16.msra.mxu0 %v2771
        %2969 = vmatpush.bf16.msra.mxu0 %v2768
        %2970 = vmatpush.bf16.msra.mxu0 %v2765
        %2971 = vmatmul.bf16.gmra.mxu0 %v2369
        %v2972 = vpop.f32.mrf.mxu0
        %v2973 = vadd.f32 %v2960, %v2972
        %v2974 = vpop.f32.mrf.mxu0
        %2975 = vdwg.mxu0
        %2976 = vst [vmem:[%s263] sm:$0xff] %v2895
        %2977 = vst [vmem:[%s263 + $0x8] sm:$0xff] %v2934
        %2978 = vst [vmem:[%s263 + $0x10] sm:$0xff] %v2973
        %s2979 = sand.u32 %s120, 1
        %s2980 = scalar_lea.sflag [#allocation4], %s2979
        %s2981 = sand.u32 %s120, 1
        %s2982 = smul.addr %s2981, 24
        %s2983 = scalar_lea.vmem [#allocation10], %s2982
        // Predicated region
        $region53: #{tpu_custom_call.1} parent=35 // pred_check
          %p2984 = pneg %p130
        $region54: #{tpu_custom_call.1} parent=35 // pred_check_branch
          %2986 = sbr.rel (%p2984) target = $region56
        $region55: #{tpu_custom_call.1} parent=35 // pred_region
          %2988 = vsyncadd %s2980, 0
          %s2989 = smul.addr %s23, 3
          %s2990 = smul.addr %s2989, 8
          %s2991 = scalar_lea.hbm %s4, %s2990
          %s2993 = sshll.u32 %s2983, 4
          %s2994 = int_to_ptr.vmem [resolvable:$true] %s2993
          %s2995 = sshll.u32 %s2991, 4
          %s2996 = int_to_ptr.hbm [resolvable:$true] %s2995
          %2998 = dma.vmem_to_hbm [thread:$0]  %s2994, 384, %s2996, %s2980
        $region56: #{tpu_custom_call.1} parent=35 // pred_fallthru
          _
      $region36: #{tpu_custom_call.1} parent=5 // pred_fallthru
        _
      %p2999 = scmp.le.s32.totalorder 2, %s18
      // Predicated region
      $region57: #{tpu_custom_call.1} parent=5 // pred_check
        %p3000 = pneg %p2999
      $region58: #{tpu_custom_call.1} parent=5 // pred_check_branch
        %3002 = sbr.rel (%p3000) target = $region60
      $region59: #{tpu_custom_call.1} parent=5 // pred_region
        %s3003 = ssub.s32 %s18, 2
        // Predicated region
        $region61: #{tpu_custom_call.1} parent=59 // pred_check
          %p3004 = pneg %p136
        $region62: #{tpu_custom_call.1} parent=59 // pred_check_branch
          %3006 = sbr.rel (%p3004) target = $region64
        $region63: #{tpu_custom_call.1} parent=59 // pred_region
          %s3007 = sand.u32 %s121, 1
          %s3008 = scalar_lea.sflag [#allocation4], %s3007
          %s3009 = sand.u32 %s121, 1
          %s3010 = smul.addr %s3009, 24
          %s3011 = scalar_lea.vmem [#allocation10], %s3010
          %3013 = dma.done %s3008, 384
        $region64: #{tpu_custom_call.1} parent=59 // pred_fallthru
          _
      $region60: #{tpu_custom_call.1} parent=5 // pred_fallthru
        _
    $region6: #{tpu_custom_call.1} parent=1 // loop_footer
      %s22 = sadd.s32 1, %s18
    $region7: #{tpu_custom_call.1} parent=1 // loop_footer_branch
      %17 = sbr.rel target = $region3
    $region8: #{tpu_custom_call.1} parent=1 // loop_exit
      _
    %3014 = vsyncpa [#allocation3], 1
    %s3015 = scalar_lea.sflag [#allocation3], 1
    %3016 = vsyncpa %s3015, 1
    %3017 = vsyncpa [#allocation6], 1
    %3018 = vsyncpa [#allocation9], 1
    %3019 = vsyncpa [#allocation4], 1
    %s3020 = scalar_lea.sflag [#allocation4], 1
    %3021 = vsyncpa %s3020, 1

</llo_original>
